<compile_context>
chip_gen: v6e
topology: v6e:2x2x1
jax: 0.10.0
libtpu: 0.0.40
codegen_flags: <defaults>
</compile_context>

<pallas_src>
import functools

import jax
import jax.numpy as jnp
from jax import lax
from jax.experimental import pallas as pl
from jax.experimental.pallas import tpu as pltpu


def _addnorm(t):
    """(t - mean) * rsqrt(var + 1e-5), unbiased variance (torch.var_mean default)."""
    c = t.shape[-1]
    mean = jnp.mean(t, axis=-1, keepdims=True)
    d = t - mean
    var = jnp.sum(d * d, axis=-1, keepdims=True) * (1.0 / (c - 1))
    return d * lax.rsqrt(var + 1e-5)


def encoder_block_kernel(x_ref,
                         wqkv_ref, bqkv_ref,
                         w1_ref, b1_ref, w2_ref, b2_ref,
                         wf_ref, bf_ref,
                         out_ref,
                         z2_scr,
                         *, n_heads, bblk, seq_len):
    M, C = x_ref.shape                      # M = Bblk * T (2-D, already flattened)
    T = seq_len
    Dh = C // n_heads
    scale = 1.0 / (Dh ** 0.5)
    bf16 = jnp.bfloat16
    f32 = jnp.float32

    # Everything up to add&norm-2 only depends on the row block (grid axis 0).  Compute it
    # once per row block (on the first vocab tile) and cache z2 in VMEM scratch.
    @pl.when(pl.program_id(1) == 0)
    def _compute_z2():
        x2d = x_ref[...]                                      # (M, C) f32
        xb = x2d.astype(bf16)

        # --- fused QKV projection: one wide bf16 MXU matmul, f32 accumulation ---
        qkv = jnp.dot(xb, wqkv_ref[...], preferred_element_type=f32) + bqkv_ref[...]
        q3 = qkv[:, 0 * C:1 * C].reshape(bblk, T, C)
        k3 = qkv[:, 1 * C:2 * C].reshape(bblk, T, C)
        v3 = qkv[:, 2 * C:3 * C].reshape(bblk, T, C)

        # --- unmasked multi-head self-attention, row-block-batched per head ---
        head_outs = []
        for h in range(n_heads):
            cols = slice(h * Dh, (h + 1) * Dh)
            qh = q3[:, :, cols].astype(bf16)                  # (Bblk, T, Dh)
            kh = k3[:, :, cols].astype(bf16)
            vh = v3[:, :, cols].astype(bf16)
            s = jnp.einsum("btd,bsd->bts", qh, kh,
                           preferred_element_type=f32) * scale
            s = s - jnp.max(s, axis=-1, keepdims=True)
            p = jnp.exp(s)
            p = p * pl.reciprocal(jnp.sum(p, axis=-1, keepdims=True), approx=True)
            head_outs.append(jnp.einsum("bts,bsd->btd", p.astype(bf16), vh,
                                        preferred_element_type=f32))
        attn = jnp.concatenate(head_outs, axis=-1).reshape(M, C)

        # --- add & norm 1 (dropout1 is identity: eval-mode semantics) ---
        # TODO(synk): torch.nn.Dropout(0.1) train-mode masking not reproduced (inference).
        z = _addnorm(x2d + attn)

        # --- feed-forward network (bf16 MXU operands, f32 accumulation / activations) ---
        h1 = jnp.dot(z.astype(bf16), w1_ref[...], preferred_element_type=f32) + b1_ref[...]
        h1 = jnp.maximum(h1, 0.0)
        a = jnp.dot(h1.astype(bf16), w2_ref[...], preferred_element_type=f32) + b2_ref[...]

        # --- add & norm 2 (dropout2 identity); cache bf16 (it only feeds a bf16 matmul) ---
        z2_scr[...] = _addnorm(z + a).astype(bf16)

    # --- final vocab projection for this (row block, vocab tile): lane-dense store ---
    out = jnp.dot(z2_scr[...], wf_ref[...], preferred_element_type=f32) + bf_ref[...]
    out_ref[...] = out.astype(out_ref.dtype)


def _vmem_budget_bytes():
    """Per-generation VMEM budget with headroom (~50 MiB on v7x, ~100 MiB on v5e/v6e)."""
    try:
        info = pltpu.get_tpu_info()
        cap = getattr(info, "vmem_capacity_bytes", None)
        if cap:
            return int(cap * 0.78)
    except Exception:  # best-effort hardware query only; fall back to compiler default
        return None
    return None


def _pick_vocab_tile(vpad, target=1024):
    """Largest multiple of 128 dividing Vpad, capped at `target` lanes."""
    best = 128
    t = 128
    while t <= min(vpad, target):
        if vpad % t == 0:
            best = t
        t += 128
    return best


def _pick_block_b(b_total, t, *, c, hid, tn, vmem_budget, target_rows=1024):
    """Row-block batch size: big rows for the MXU, >=2 grid steps for v7x, fits VMEM."""
    cap = max(1, target_rows // max(t, 1))
    if b_total >= 2:
        cap = min(cap, max(1, b_total // 2))   # >= 2 grid steps so both v7x TCs get work
    divisors = [d for d in range(1, b_total + 1) if b_total % d == 0]
    cands = [d for d in divisors if d <= cap and (d * t) % 8 == 0]
    if not cands:
        cands = [d for d in divisors if (d * t) % 8 == 0] or [b_total]

    def est(d):  # rough per-step VMEM footprint in bytes
        m = d * t
        weights = 2 * (3 * c * c + 2 * c * hid) + 2 * 2 * (c * tn + tn)   # bf16 (wf dbl-buf)
        per_row = (2 * c + 2 * tn) * 4 + 2 * c + (7 * c + hid) * 4        # blocks + temps
        return weights + m * per_row

    for d in sorted(cands, reverse=True):
        if vmem_budget is None or est(d) <= 0.6 * vmem_budget:
            return d
    return min(cands)


def encoder_block(x, params, *, n_heads):
    B, T, C = x.shape
    Hid = params["w1"].shape[1]
    V = params["wf"].shape[1]
    Vpad = ((V + 127) // 128) * 128                # lane-dense output width
    f32, bf16 = jnp.float32, jnp.bfloat16

    TN = _pick_vocab_tile(Vpad)
    vmem_budget = _vmem_budget_bytes()
    Bblk = _pick_block_b(B, T, c=C, hid=Hid, tn=TN, vmem_budget=vmem_budget)
    Mblk = Bblk * T

    # Fused QKV weights; MXU operands bf16, biases added to f32 accumulators.
    wqkv = jnp.concatenate([params["wq"], params["wk"], params["wv"]], axis=1).astype(bf16)
    bqkv = jnp.concatenate([params["bq"], params["bk"], params["bv"]], axis=1).astype(f32)
    w1 = params["w1"].astype(bf16)
    b1 = params["b1"].astype(f32)
    w2 = params["w2"].astype(bf16)
    b2 = params["b2"].astype(f32)
    wf = jnp.pad(params["wf"].astype(bf16), ((0, 0), (0, Vpad - V)))
    bfin = jnp.pad(params["bf"].astype(f32), ((0, 0), (0, Vpad - V)))

    x2d = x.astype(f32).reshape(B * T, C)          # reshape in the wrapper, not the kernel

    kernel = functools.partial(encoder_block_kernel, n_heads=n_heads, bblk=Bblk, seq_len=T)

    cp_kwargs = dict(dimension_semantics=("parallel", "arbitrary"))
    if vmem_budget is not None:
        cp_kwargs["vmem_limit_bytes"] = vmem_budget

    def build(single_buffer_weights):
        def wspec(shape):
            if single_buffer_weights:
                # Constant index_map -> a second pipeline buffer is pure VMEM waste.
                return pl.BlockSpec(shape, lambda b, n: (0, 0),
                                    pipeline_mode=pl.Buffered(1))
            return pl.BlockSpec(shape, lambda b, n: (0, 0))

        return pl.pallas_call(
            kernel,
            out_shape=jax.ShapeDtypeStruct((B * T, Vpad), f32),
            grid_spec=pltpu.PrefetchScalarGridSpec(
                num_scalar_prefetch=0,
                grid=(B // Bblk, Vpad // TN),
                in_specs=[
                    pl.BlockSpec((Mblk, C), lambda b, n: (b, 0)),      # x rows (2-D slab)
                    wspec((C, 3 * C)), wspec((1, 3 * C)),              # Wqkv, bqkv
                    wspec((C, Hid)), wspec((1, Hid)),                  # W1, b1
                    wspec((Hid, C)), wspec((1, C)),                    # W2, b2
                    pl.BlockSpec((C, TN), lambda b, n: (0, n)),        # Wfinal vocab tile
                    pl.BlockSpec((1, TN), lambda b, n: (0, n)),        # bfinal vocab tile
                ],
                out_specs=pl.BlockSpec((Mblk, TN), lambda b, n: (b, n)),
                scratch_shapes=[pltpu.VMEM((Mblk, C), bf16)],          # cached z2 per row blk
            ),
            compiler_params=pltpu.CompilerParams(**cp_kwargs),
        )

    args = (x2d, wqkv, bqkv, w1, b1, w2, b2, wf, bfin)
    lowering_err = getattr(pltpu, "LoweringException", NotImplementedError)
    try:
        out2d = build(True)(*args)
    except (TypeError, AttributeError, NotImplementedError, ValueError, lowering_err):
        # Narrow fallback: only the pl.Buffered(1) rejection path is retried with default
        # double buffering; genuine runtime / VMEM-overrun errors propagate.
        out2d = build(False)(*args)

    return out2d[:, :V].reshape(B, T, V)


def reference_jax(x, params, *, n_heads, emulate_bf16=False):
    """Pure-JAX reference mirroring the PyTorch forward (eval-mode dropout).
    With emulate_bf16=True it applies the same bf16-operand / f32-accumulate casts
    as the kernel (for a tight numerical check)."""
    B, T, C = x.shape
    Dh = C // n_heads
    f32, bf16 = jnp.float32, jnp.bfloat16

    def mm(a, w):
        if emulate_bf16:
            return jnp.dot(a.astype(bf16), w.astype(bf16), preferred_element_type=f32)
        return jnp.dot(a, w, preferred_element_type=f32)

    x2d = x.reshape(B * T, C)
    q = mm(x2d, params["wq"]) + params["bq"]
    k = mm(x2d, params["wk"]) + params["bk"]
    v = mm(x2d, params["wv"]) + params["bv"]

    def split(t):
        return t.reshape(B, T, n_heads, Dh).transpose(0, 2, 1, 3)

    qh, kh, vh = split(q), split(k), split(v)
    if emulate_bf16:
        qh, kh, vh = qh.astype(bf16), kh.astype(bf16), vh.astype(bf16)
    scores = jnp.einsum("bhtd,bhsd->bhts", qh, kh,
                        preferred_element_type=f32) / (Dh ** 0.5)
    p = jax.nn.softmax(scores, axis=-1)
    if emulate_bf16:
        p = p.astype(bf16)
    attn = jnp.einsum("bhts,bhsd->bhtd", p, vh, preferred_element_type=f32)
    attn = attn.transpose(0, 2, 1, 3).reshape(B * T, C)

    def addnorm(t):
        mean = jnp.mean(t, axis=-1, keepdims=True)
        var = jnp.sum((t - mean) ** 2, axis=-1, keepdims=True) / (t.shape[-1] - 1)
        return (t - mean) / jnp.sqrt(var + 1e-5)

    z = addnorm(x2d + attn)
    h1 = jnp.maximum(mm(z, params["w1"]) + params["b1"], 0.0)
    a = mm(h1, params["w2"]) + params["b2"]
    z2 = addnorm(z + a)
    out = mm(z2, params["wf"]) + params["bf"]
    return out.reshape(B, T, -1)


if __name__ == "__main__":
    B, T = 2, 8
    n_features, n_heads, n_hidden, n_vocab = 32, 4, 64, 16

    key = jax.random.PRNGKey(0)
    ks = jax.random.split(key, 13)

    def init_w(k, shape, fan_in):
        return (jax.random.normal(k, shape, jnp.float32) / jnp.sqrt(fan_in)).astype(jnp.float32)

    # Weights stored pre-transposed as (in, out) so the kernel does x @ W + b.
    params = {
        "wq": init_w(ks[0], (n_features, n_features), n_features),
        "bq": init_w(ks[1], (1, n_features), n_features),
        "wk": init_w(ks[2], (n_features, n_features), n_features),
        "bk": init_w(ks[3], (1, n_features), n_features),
        "wv": init_w(ks[4], (n_features, n_features), n_features),
        "bv": init_w(ks[5], (1, n_features), n_features),
        "w1": init_w(ks[6], (n_features, n_hidden), n_features),
        "b1": init_w(ks[7], (1, n_hidden), n_features),
        "w2": init_w(ks[8], (n_hidden, n_features), n_hidden),
        "b2": init_w(ks[9], (1, n_features), n_hidden),
        "wf": init_w(ks[10], (n_features, n_vocab), n_features),
        "bf": init_w(ks[11], (1, n_vocab), n_features),
    }
    x = jax.random.normal(ks[12], (B, T, n_features), jnp.float32)

    out = jax.block_until_ready(encoder_block(x, params, n_heads=n_heads))
    assert out.shape == (B, T, n_vocab)

    # Tight check against a JAX reference that emulates the kernel's bf16 MXU casts.
    ref_bf16 = reference_jax(x, params, n_heads=n_heads, emulate_bf16=True)
    assert jnp.allclose(out, ref_bf16, atol=3e-2, rtol=3e-2), "mismatch vs bf16 reference"

    # Loose check against the full-f32 reference (bf16 MXU operands -> ~1e-2 rel error).
    ref_f32 = reference_jax(x, params, n_heads=n_heads, emulate_bf16=False)
    assert jnp.allclose(out, ref_f32, atol=1e-1, rtol=1e-1), "mismatch vs f32 reference"

    print("KERNEL_OK")
</pallas_src>

<mosaic_0001>
module attributes {stable_mosaic.version = 11 : i64} {
  func.func @encoder_block_kernel(%arg0: i32, %arg1: i32, %arg2: memref<8x32xf32, #tpu.memory_space<vmem>>, %arg3: memref<32x96xbf16, #tpu.memory_space<vmem>>, %arg4: memref<1x96xf32, #tpu.memory_space<vmem>>, %arg5: memref<32x64xbf16, #tpu.memory_space<vmem>>, %arg6: memref<1x64xf32, #tpu.memory_space<vmem>>, %arg7: memref<64x32xbf16, #tpu.memory_space<vmem>>, %arg8: memref<1x32xf32, #tpu.memory_space<vmem>>, %arg9: memref<32x128xbf16, #tpu.memory_space<vmem>>, %arg10: memref<1x128xf32, #tpu.memory_space<vmem>>, %arg11: memref<8x128xf32, #tpu.memory_space<vmem>>, %arg12: memref<8x32xbf16, #tpu.memory_space<vmem>>) attributes {dimension_semantics = [#tpu.dimension_semantics<parallel>, #tpu.dimension_semantics<arbitrary>], iteration_bounds = array<i64: 2, 1>, scalar_prefetch = 0 : i64, scratch_operands = 1 : i64, tpu.core_type = #tpu.core_type<tc>, window_params = [{transform_indices = @transform_0, window_bounds = array<i64: 8, 32>}, {pipeline_mode = #tpu.pipeline_mode<synchronous>, transform_indices = @transform_1, window_bounds = array<i64: 32, 96>}, {pipeline_mode = #tpu.pipeline_mode<synchronous>, transform_indices = @transform_2, window_bounds = array<i64: 1, 96>}, {pipeline_mode = #tpu.pipeline_mode<synchronous>, transform_indices = @transform_3, window_bounds = array<i64: 32, 64>}, {pipeline_mode = #tpu.pipeline_mode<synchronous>, transform_indices = @transform_4, window_bounds = array<i64: 1, 64>}, {pipeline_mode = #tpu.pipeline_mode<synchronous>, transform_indices = @transform_5, window_bounds = array<i64: 64, 32>}, {pipeline_mode = #tpu.pipeline_mode<synchronous>, transform_indices = @transform_6, window_bounds = array<i64: 1, 32>}, {transform_indices = @transform_7, window_bounds = array<i64: 32, 128>}, {transform_indices = @transform_8, window_bounds = array<i64: 1, 128>}, {transform_indices = @transform_9, window_bounds = array<i64: 8, 128>}]} {
    %c0_i32 = arith.constant 0 : i32
    %0 = arith.cmpi eq, %arg1, %c0_i32 : i32
    %1 = arith.extui %0 : i1 to i32
    %c0_i32_0 = arith.constant 0 : i32
    %2 = arith.cmpi ne, %1, %c0_i32_0 : i32
    scf.if %2 {
      %c0_8 = arith.constant 0 : index
      %c0_9 = arith.constant 0 : index
      %10 = vector.load %arg2[%c0_8, %c0_9] : memref<8x32xf32, #tpu.memory_space<vmem>>, vector<8x32xf32>
      %11 = arith.truncf %10 : vector<8x32xf32> to vector<8x32xbf16>
      %c0_10 = arith.constant 0 : index
      %c0_11 = arith.constant 0 : index
      %12 = vector.load %arg3[%c0_10, %c0_11] : memref<32x96xbf16, #tpu.memory_space<vmem>>, vector<32x96xbf16>
      %cst_12 = arith.constant dense<0.000000e+00> : vector<8x96xf32>
      %13 = tpu.matmul %11, %12, %cst_12 {dimension_numbers = #tpu.dot_dimension_numbers<[1], [0], [0], [1], [0, 0, 1, 1], [], []>} : vector<8x32xbf16>, vector<32x96xbf16>, vector<8x96xf32> -> vector<8x96xf32>
      %c0_13 = arith.constant 0 : index
      %c0_14 = arith.constant 0 : index
      %14 = vector.load %arg4[%c0_13, %c0_14] : memref<1x96xf32, #tpu.memory_space<vmem>>, vector<1x96xf32>
      %15 = vector.broadcast %14 : vector<1x96xf32> to vector<8x96xf32>
      %16 = arith.addf %13, %15 : vector<8x96xf32>
      %17 = vector.extract_strided_slice %16 {offsets = [0, 0], sizes = [8, 32], strides = [1, 1]} : vector<8x96xf32> to vector<8x32xf32>
      %18 = vector.shape_cast %17 : vector<8x32xf32> to vector<1x8x32xf32>
      %19 = vector.extract_strided_slice %16 {offsets = [0, 32], sizes = [8, 32], strides = [1, 1]} : vector<8x96xf32> to vector<8x32xf32>
      %20 = vector.shape_cast %19 : vector<8x32xf32> to vector<1x8x32xf32>
      %21 = vector.extract_strided_slice %16 {offsets = [0, 64], sizes = [8, 32], strides = [1, 1]} : vector<8x96xf32> to vector<8x32xf32>
      %22 = vector.shape_cast %21 : vector<8x32xf32> to vector<1x8x32xf32>
      %23 = vector.extract_strided_slice %18 {offsets = [0, 0, 0], sizes = [1, 8, 8], strides = [1, 1, 1]} : vector<1x8x32xf32> to vector<1x8x8xf32>
      %24 = arith.truncf %23 : vector<1x8x8xf32> to vector<1x8x8xbf16>
      %25 = vector.extract_strided_slice %20 {offsets = [0, 0, 0], sizes = [1, 8, 8], strides = [1, 1, 1]} : vector<1x8x32xf32> to vector<1x8x8xf32>
      %26 = arith.truncf %25 : vector<1x8x8xf32> to vector<1x8x8xbf16>
      %27 = vector.extract_strided_slice %22 {offsets = [0, 0, 0], sizes = [1, 8, 8], strides = [1, 1, 1]} : vector<1x8x32xf32> to vector<1x8x8xf32>
      %28 = arith.truncf %27 : vector<1x8x8xf32> to vector<1x8x8xbf16>
      "tpu.trace_start"() <{level = 10 : i32, message = "btd,bsd->bts"}> : () -> ()
      %cst_15 = arith.constant dense<0.000000e+00> : vector<1x8x8xf32>
      %29 = tpu.matmul %24, %26, %cst_15 {dimension_numbers = #tpu.dot_dimension_numbers<[2], [2], [1], [1], [0, 0, 0, 1, 1, 1], [0], [0]>} : vector<1x8x8xbf16>, vector<1x8x8xbf16>, vector<1x8x8xf32> -> vector<1x8x8xf32>
      "tpu.trace_stop"() : () -> ()
      %cst_16 = arith.constant 0.353553385 : f32
      %30 = vector.broadcast %cst_16 : f32 to vector<1x8x8xf32>
      %31 = arith.mulf %29, %30 : vector<1x8x8xf32>
      %cst_17 = arith.constant dense<0xFF800000> : vector<1x8xf32>
      %32 = vector.multi_reduction <maximumf>, %31, %cst_17 [2] : vector<1x8x8xf32> to vector<1x8xf32>
      %33 = vector.shape_cast %32 : vector<1x8xf32> to vector<1x8x1xf32>
      %34 = vector.broadcast %33 : vector<1x8x1xf32> to vector<1x8x8xf32>
      %35 = arith.subf %31, %34 : vector<1x8x8xf32>
      %36 = math.exp %35 : vector<1x8x8xf32>
      %cst_18 = arith.constant dense<0.000000e+00> : vector<1x8xf32>
      %37 = vector.multi_reduction <add>, %36, %cst_18 [2] : vector<1x8x8xf32> to vector<1x8xf32>
      %38 = vector.shape_cast %37 : vector<1x8xf32> to vector<1x8x1xf32>
      %39 = tpu.reciprocal %38 {approx = true} : vector<1x8x1xf32> -> vector<1x8x1xf32>
      %40 = vector.broadcast %39 : vector<1x8x1xf32> to vector<1x8x8xf32>
      %41 = arith.mulf %36, %40 : vector<1x8x8xf32>
      %42 = arith.truncf %41 : vector<1x8x8xf32> to vector<1x8x8xbf16>
      "tpu.trace_start"() <{level = 10 : i32, message = "bts,bsd->btd"}> : () -> ()
      %cst_19 = arith.constant dense<0.000000e+00> : vector<1x8x8xf32>
      %43 = tpu.matmul %42, %28, %cst_19 {dimension_numbers = #tpu.dot_dimension_numbers<[2], [1], [1], [2], [0, 0, 0, 1, 1, 2], [0], [0]>} : vector<1x8x8xbf16>, vector<1x8x8xbf16>, vector<1x8x8xf32> -> vector<1x8x8xf32>
      "tpu.trace_stop"() : () -> ()
      %44 = vector.extract_strided_slice %18 {offsets = [0, 0, 8], sizes = [1, 8, 8], strides = [1, 1, 1]} : vector<1x8x32xf32> to vector<1x8x8xf32>
      %45 = arith.truncf %44 : vector<1x8x8xf32> to vector<1x8x8xbf16>
      %46 = vector.extract_strided_slice %20 {offsets = [0, 0, 8], sizes = [1, 8, 8], strides = [1, 1, 1]} : vector<1x8x32xf32> to vector<1x8x8xf32>
      %47 = arith.truncf %46 : vector<1x8x8xf32> to vector<1x8x8xbf16>
      %48 = vector.extract_strided_slice %22 {offsets = [0, 0, 8], sizes = [1, 8, 8], strides = [1, 1, 1]} : vector<1x8x32xf32> to vector<1x8x8xf32>
      %49 = arith.truncf %48 : vector<1x8x8xf32> to vector<1x8x8xbf16>
      "tpu.trace_start"() <{level = 10 : i32, message = "btd,bsd->bts"}> : () -> ()
      %cst_20 = arith.constant dense<0.000000e+00> : vector<1x8x8xf32>
      %50 = tpu.matmul %45, %47, %cst_20 {dimension_numbers = #tpu.dot_dimension_numbers<[2], [2], [1], [1], [0, 0, 0, 1, 1, 1], [0], [0]>} : vector<1x8x8xbf16>, vector<1x8x8xbf16>, vector<1x8x8xf32> -> vector<1x8x8xf32>
      "tpu.trace_stop"() : () -> ()
      %cst_21 = arith.constant 0.353553385 : f32
      %51 = vector.broadcast %cst_21 : f32 to vector<1x8x8xf32>
      %52 = arith.mulf %50, %51 : vector<1x8x8xf32>
      %cst_22 = arith.constant dense<0xFF800000> : vector<1x8xf32>
      %53 = vector.multi_reduction <maximumf>, %52, %cst_22 [2] : vector<1x8x8xf32> to vector<1x8xf32>
      %54 = vector.shape_cast %53 : vector<1x8xf32> to vector<1x8x1xf32>
      %55 = vector.broadcast %54 : vector<1x8x1xf32> to vector<1x8x8xf32>
      %56 = arith.subf %52, %55 : vector<1x8x8xf32>
      %57 = math.exp %56 : vector<1x8x8xf32>
      %cst_23 = arith.constant dense<0.000000e+00> : vector<1x8xf32>
      %58 = vector.multi_reduction <add>, %57, %cst_23 [2] : vector<1x8x8xf32> to vector<1x8xf32>
      %59 = vector.shape_cast %58 : vector<1x8xf32> to vector<1x8x1xf32>
      %60 = tpu.reciprocal %59 {approx = true} : vector<1x8x1xf32> -> vector<1x8x1xf32>
      %61 = vector.broadcast %60 : vector<1x8x1xf32> to vector<1x8x8xf32>
      %62 = arith.mulf %57, %61 : vector<1x8x8xf32>
      %63 = arith.truncf %62 : vector<1x8x8xf32> to vector<1x8x8xbf16>
      "tpu.trace_start"() <{level = 10 : i32, message = "bts,bsd->btd"}> : () -> ()
      %cst_24 = arith.constant dense<0.000000e+00> : vector<1x8x8xf32>
      %64 = tpu.matmul %63, %49, %cst_24 {dimension_numbers = #tpu.dot_dimension_numbers<[2], [1], [1], [2], [0, 0, 0, 1, 1, 2], [0], [0]>} : vector<1x8x8xbf16>, vector<1x8x8xbf16>, vector<1x8x8xf32> -> vector<1x8x8xf32>
      "tpu.trace_stop"() : () -> ()
      %65 = vector.extract_strided_slice %18 {offsets = [0, 0, 16], sizes = [1, 8, 8], strides = [1, 1, 1]} : vector<1x8x32xf32> to vector<1x8x8xf32>
      %66 = arith.truncf %65 : vector<1x8x8xf32> to vector<1x8x8xbf16>
      %67 = vector.extract_strided_slice %20 {offsets = [0, 0, 16], sizes = [1, 8, 8], strides = [1, 1, 1]} : vector<1x8x32xf32> to vector<1x8x8xf32>
      %68 = arith.truncf %67 : vector<1x8x8xf32> to vector<1x8x8xbf16>
      %69 = vector.extract_strided_slice %22 {offsets = [0, 0, 16], sizes = [1, 8, 8], strides = [1, 1, 1]} : vector<1x8x32xf32> to vector<1x8x8xf32>
      %70 = arith.truncf %69 : vector<1x8x8xf32> to vector<1x8x8xbf16>
      "tpu.trace_start"() <{level = 10 : i32, message = "btd,bsd->bts"}> : () -> ()
      %cst_25 = arith.constant dense<0.000000e+00> : vector<1x8x8xf32>
      %71 = tpu.matmul %66, %68, %cst_25 {dimension_numbers = #tpu.dot_dimension_numbers<[2], [2], [1], [1], [0, 0, 0, 1, 1, 1], [0], [0]>} : vector<1x8x8xbf16>, vector<1x8x8xbf16>, vector<1x8x8xf32> -> vector<1x8x8xf32>
      "tpu.trace_stop"() : () -> ()
      %cst_26 = arith.constant 0.353553385 : f32
      %72 = vector.broadcast %cst_26 : f32 to vector<1x8x8xf32>
      %73 = arith.mulf %71, %72 : vector<1x8x8xf32>
      %cst_27 = arith.constant dense<0xFF800000> : vector<1x8xf32>
      %74 = vector.multi_reduction <maximumf>, %73, %cst_27 [2] : vector<1x8x8xf32> to vector<1x8xf32>
      %75 = vector.shape_cast %74 : vector<1x8xf32> to vector<1x8x1xf32>
      %76 = vector.broadcast %75 : vector<1x8x1xf32> to vector<1x8x8xf32>
      %77 = arith.subf %73, %76 : vector<1x8x8xf32>
      %78 = math.exp %77 : vector<1x8x8xf32>
      %cst_28 = arith.constant dense<0.000000e+00> : vector<1x8xf32>
      %79 = vector.multi_reduction <add>, %78, %cst_28 [2] : vector<1x8x8xf32> to vector<1x8xf32>
      %80 = vector.shape_cast %79 : vector<1x8xf32> to vector<1x8x1xf32>
      %81 = tpu.reciprocal %80 {approx = true} : vector<1x8x1xf32> -> vector<1x8x1xf32>
      %82 = vector.broadcast %81 : vector<1x8x1xf32> to vector<1x8x8xf32>
      %83 = arith.mulf %78, %82 : vector<1x8x8xf32>
      %84 = arith.truncf %83 : vector<1x8x8xf32> to vector<1x8x8xbf16>
      "tpu.trace_start"() <{level = 10 : i32, message = "bts,bsd->btd"}> : () -> ()
      %cst_29 = arith.constant dense<0.000000e+00> : vector<1x8x8xf32>
      %85 = tpu.matmul %84, %70, %cst_29 {dimension_numbers = #tpu.dot_dimension_numbers<[2], [1], [1], [2], [0, 0, 0, 1, 1, 2], [0], [0]>} : vector<1x8x8xbf16>, vector<1x8x8xbf16>, vector<1x8x8xf32> -> vector<1x8x8xf32>
      "tpu.trace_stop"() : () -> ()
      %86 = vector.extract_strided_slice %18 {offsets = [0, 0, 24], sizes = [1, 8, 8], strides = [1, 1, 1]} : vector<1x8x32xf32> to vector<1x8x8xf32>
      %87 = arith.truncf %86 : vector<1x8x8xf32> to vector<1x8x8xbf16>
      %88 = vector.extract_strided_slice %20 {offsets = [0, 0, 24], sizes = [1, 8, 8], strides = [1, 1, 1]} : vector<1x8x32xf32> to vector<1x8x8xf32>
      %89 = arith.truncf %88 : vector<1x8x8xf32> to vector<1x8x8xbf16>
      %90 = vector.extract_strided_slice %22 {offsets = [0, 0, 24], sizes = [1, 8, 8], strides = [1, 1, 1]} : vector<1x8x32xf32> to vector<1x8x8xf32>
      %91 = arith.truncf %90 : vector<1x8x8xf32> to vector<1x8x8xbf16>
      "tpu.trace_start"() <{level = 10 : i32, message = "btd,bsd->bts"}> : () -> ()
      %cst_30 = arith.constant dense<0.000000e+00> : vector<1x8x8xf32>
      %92 = tpu.matmul %87, %89, %cst_30 {dimension_numbers = #tpu.dot_dimension_numbers<[2], [2], [1], [1], [0, 0, 0, 1, 1, 1], [0], [0]>} : vector<1x8x8xbf16>, vector<1x8x8xbf16>, vector<1x8x8xf32> -> vector<1x8x8xf32>
      "tpu.trace_stop"() : () -> ()
      %cst_31 = arith.constant 0.353553385 : f32
      %93 = vector.broadcast %cst_31 : f32 to vector<1x8x8xf32>
      %94 = arith.mulf %92, %93 : vector<1x8x8xf32>
      %cst_32 = arith.constant dense<0xFF800000> : vector<1x8xf32>
      %95 = vector.multi_reduction <maximumf>, %94, %cst_32 [2] : vector<1x8x8xf32> to vector<1x8xf32>
      %96 = vector.shape_cast %95 : vector<1x8xf32> to vector<1x8x1xf32>
      %97 = vector.broadcast %96 : vector<1x8x1xf32> to vector<1x8x8xf32>
      %98 = arith.subf %94, %97 : vector<1x8x8xf32>
      %99 = math.exp %98 : vector<1x8x8xf32>
      %cst_33 = arith.constant dense<0.000000e+00> : vector<1x8xf32>
      %100 = vector.multi_reduction <add>, %99, %cst_33 [2] : vector<1x8x8xf32> to vector<1x8xf32>
      %101 = vector.shape_cast %100 : vector<1x8xf32> to vector<1x8x1xf32>
      %102 = tpu.reciprocal %101 {approx = true} : vector<1x8x1xf32> -> vector<1x8x1xf32>
      %103 = vector.broadcast %102 : vector<1x8x1xf32> to vector<1x8x8xf32>
      %104 = arith.mulf %99, %103 : vector<1x8x8xf32>
      %105 = arith.truncf %104 : vector<1x8x8xf32> to vector<1x8x8xbf16>
      "tpu.trace_start"() <{level = 10 : i32, message = "bts,bsd->btd"}> : () -> ()
      %cst_34 = arith.constant dense<0.000000e+00> : vector<1x8x8xf32>
      %106 = tpu.matmul %105, %91, %cst_34 {dimension_numbers = #tpu.dot_dimension_numbers<[2], [1], [1], [2], [0, 0, 0, 1, 1, 2], [0], [0]>} : vector<1x8x8xbf16>, vector<1x8x8xbf16>, vector<1x8x8xf32> -> vector<1x8x8xf32>
      "tpu.trace_stop"() : () -> ()
      %107 = tpu.concatenate %43, %64, %85, %106 in 2 : vector<1x8x8xf32>, vector<1x8x8xf32>, vector<1x8x8xf32>, vector<1x8x8xf32> -> vector<1x8x32xf32>
      %108 = vector.shape_cast %107 : vector<1x8x32xf32> to vector<8x32xf32>
      %109 = arith.addf %10, %108 : vector<8x32xf32>
      %cst_35 = arith.constant dense<0.000000e+00> : vector<8xf32>
      %110 = vector.multi_reduction <add>, %109, %cst_35 [1] : vector<8x32xf32> to vector<8xf32>
      %111 = vector.shape_cast %110 : vector<8xf32> to vector<8x1xf32>
      %cst_36 = arith.constant 3.200000e+01 : f32
      %112 = vector.broadcast %cst_36 : f32 to vector<8x1xf32>
      %113 = arith.divf %111, %112 : vector<8x1xf32>
      %114 = vector.broadcast %113 : vector<8x1xf32> to vector<8x32xf32>
      %115 = arith.subf %109, %114 : vector<8x32xf32>
      %116 = arith.mulf %115, %115 : vector<8x32xf32>
      %cst_37 = arith.constant dense<0.000000e+00> : vector<8xf32>
      %117 = vector.multi_reduction <add>, %116, %cst_37 [1] : vector<8x32xf32> to vector<8xf32>
      %118 = vector.shape_cast %117 : vector<8xf32> to vector<8x1xf32>
      %cst_38 = arith.constant 0.0322580636 : f32
      %119 = vector.broadcast %cst_38 : f32 to vector<8x1xf32>
      %120 = arith.mulf %118, %119 : vector<8x1xf32>
      %cst_39 = arith.constant 9.99999974E-6 : f32
      %121 = vector.broadcast %cst_39 : f32 to vector<8x1xf32>
      %122 = arith.addf %120, %121 : vector<8x1xf32>
      %123 = math.rsqrt %122 : vector<8x1xf32>
      %124 = vector.broadcast %123 : vector<8x1xf32> to vector<8x32xf32>
      %125 = arith.mulf %115, %124 : vector<8x32xf32>
      %126 = arith.truncf %125 : vector<8x32xf32> to vector<8x32xbf16>
      %c0_40 = arith.constant 0 : index
      %c0_41 = arith.constant 0 : index
      %127 = vector.load %arg5[%c0_40, %c0_41] : memref<32x64xbf16, #tpu.memory_space<vmem>>, vector<32x64xbf16>
      %cst_42 = arith.constant dense<0.000000e+00> : vector<8x64xf32>
      %128 = tpu.matmul %126, %127, %cst_42 {dimension_numbers = #tpu.dot_dimension_numbers<[1], [0], [0], [1], [0, 0, 1, 1], [], []>} : vector<8x32xbf16>, vector<32x64xbf16>, vector<8x64xf32> -> vector<8x64xf32>
      %c0_43 = arith.constant 0 : index
      %c0_44 = arith.constant 0 : index
      %129 = vector.load %arg6[%c0_43, %c0_44] : memref<1x64xf32, #tpu.memory_space<vmem>>, vector<1x64xf32>
      %130 = vector.broadcast %129 : vector<1x64xf32> to vector<8x64xf32>
      %131 = arith.addf %128, %130 : vector<8x64xf32>
      %cst_45 = arith.constant 0.000000e+00 : f32
      %132 = vector.broadcast %cst_45 : f32 to vector<8x64xf32>
      %133 = arith.maximumf %131, %132 : vector<8x64xf32>
      %134 = arith.truncf %133 : vector<8x64xf32> to vector<8x64xbf16>
      %c0_46 = arith.constant 0 : index
      %c0_47 = arith.constant 0 : index
      %135 = vector.load %arg7[%c0_46, %c0_47] : memref<64x32xbf16, #tpu.memory_space<vmem>>, vector<64x32xbf16>
      %cst_48 = arith.constant dense<0.000000e+00> : vector<8x32xf32>
      %136 = tpu.matmul %134, %135, %cst_48 {dimension_numbers = #tpu.dot_dimension_numbers<[1], [0], [0], [1], [0, 0, 1, 1], [], []>} : vector<8x64xbf16>, vector<64x32xbf16>, vector<8x32xf32> -> vector<8x32xf32>
      %c0_49 = arith.constant 0 : index
      %c0_50 = arith.constant 0 : index
      %137 = vector.load %arg8[%c0_49, %c0_50] : memref<1x32xf32, #tpu.memory_space<vmem>>, vector<1x32xf32>
      %138 = vector.broadcast %137 : vector<1x32xf32> to vector<8x32xf32>
      %139 = arith.addf %136, %138 : vector<8x32xf32>
      %140 = arith.addf %125, %139 : vector<8x32xf32>
      %cst_51 = arith.constant dense<0.000000e+00> : vector<8xf32>
      %141 = vector.multi_reduction <add>, %140, %cst_51 [1] : vector<8x32xf32> to vector<8xf32>
      %142 = vector.shape_cast %141 : vector<8xf32> to vector<8x1xf32>
      %cst_52 = arith.constant 3.200000e+01 : f32
      %143 = vector.broadcast %cst_52 : f32 to vector<8x1xf32>
      %144 = arith.divf %142, %143 : vector<8x1xf32>
      %145 = vector.broadcast %144 : vector<8x1xf32> to vector<8x32xf32>
      %146 = arith.subf %140, %145 : vector<8x32xf32>
      %147 = arith.mulf %146, %146 : vector<8x32xf32>
      %cst_53 = arith.constant dense<0.000000e+00> : vector<8xf32>
      %148 = vector.multi_reduction <add>, %147, %cst_53 [1] : vector<8x32xf32> to vector<8xf32>
      %149 = vector.shape_cast %148 : vector<8xf32> to vector<8x1xf32>
      %cst_54 = arith.constant 0.0322580636 : f32
      %150 = vector.broadcast %cst_54 : f32 to vector<8x1xf32>
      %151 = arith.mulf %149, %150 : vector<8x1xf32>
      %cst_55 = arith.constant 9.99999974E-6 : f32
      %152 = vector.broadcast %cst_55 : f32 to vector<8x1xf32>
      %153 = arith.addf %151, %152 : vector<8x1xf32>
      %154 = math.rsqrt %153 : vector<8x1xf32>
      %155 = vector.broadcast %154 : vector<8x1xf32> to vector<8x32xf32>
      %156 = arith.mulf %146, %155 : vector<8x32xf32>
      %157 = arith.truncf %156 : vector<8x32xf32> to vector<8x32xbf16>
      %c0_56 = arith.constant 0 : index
      %c0_57 = arith.constant 0 : index
      %158 = vector.load %arg12[%c0_56, %c0_57] : memref<8x32xbf16, #tpu.memory_space<vmem>>, vector<8x32xbf16>
      tpu.vector_store %arg12[%c0_56, %c0_57], %157 {strides = array<i32>} : memref<8x32xbf16, #tpu.memory_space<vmem>>, vector<8x32xbf16>,
    } else {
    }
    %c0 = arith.constant 0 : index
    %c0_1 = arith.constant 0 : index
    %3 = vector.load %arg12[%c0, %c0_1] : memref<8x32xbf16, #tpu.memory_space<vmem>>, vector<8x32xbf16>
    %c0_2 = arith.constant 0 : index
    %c0_3 = arith.constant 0 : index
    %4 = vector.load %arg9[%c0_2, %c0_3] : memref<32x128xbf16, #tpu.memory_space<vmem>>, vector<32x128xbf16>
    %cst = arith.constant dense<0.000000e+00> : vector<8x128xf32>
    %5 = tpu.matmul %3, %4, %cst {dimension_numbers = #tpu.dot_dimension_numbers<[1], [0], [0], [1], [0, 0, 1, 1], [], []>} : vector<8x32xbf16>, vector<32x128xbf16>, vector<8x128xf32> -> vector<8x128xf32>
    %c0_4 = arith.constant 0 : index
    %c0_5 = arith.constant 0 : index
    %6 = vector.load %arg10[%c0_4, %c0_5] : memref<1x128xf32, #tpu.memory_space<vmem>>, vector<1x128xf32>
    %7 = vector.broadcast %6 : vector<1x128xf32> to vector<8x128xf32>
    %8 = arith.addf %5, %7 : vector<8x128xf32>
    %c0_6 = arith.constant 0 : index
    %c0_7 = arith.constant 0 : index
    %9 = vector.load %arg11[%c0_6, %c0_7] : memref<8x128xf32, #tpu.memory_space<vmem>>, vector<8x128xf32>
    tpu.vector_store %arg11[%c0_6, %c0_7], %8 {strides = array<i32>} : memref<8x128xf32, #tpu.memory_space<vmem>>, vector<8x128xf32>,
    return
  }
  func.func @transform_0(%arg0: i32, %arg1: i32) -> (i32, i32) {
    %c0_i32 = arith.constant 0 : i32
    %c0_i32_0 = arith.constant 0 : i32
    return %arg0, %c0_i32 : i32, i32
  }
  func.func @transform_1(%arg0: i32, %arg1: i32) -> (i32, i32) {
    %c0_i32 = arith.constant 0 : i32
    %c0_i32_0 = arith.constant 0 : i32
    %c0_i32_1 = arith.constant 0 : i32
    return %c0_i32, %c0_i32_0 : i32, i32
  }
  func.func @transform_2(%arg0: i32, %arg1: i32) -> (i32, i32) {
    %c0_i32 = arith.constant 0 : i32
    %c0_i32_0 = arith.constant 0 : i32
    %c0_i32_1 = arith.constant 0 : i32
    return %c0_i32, %c0_i32_0 : i32, i32
  }
  func.func @transform_3(%arg0: i32, %arg1: i32) -> (i32, i32) {
    %c0_i32 = arith.constant 0 : i32
    %c0_i32_0 = arith.constant 0 : i32
    %c0_i32_1 = arith.constant 0 : i32
    return %c0_i32, %c0_i32_0 : i32, i32
  }
  func.func @transform_4(%arg0: i32, %arg1: i32) -> (i32, i32) {
    %c0_i32 = arith.constant 0 : i32
    %c0_i32_0 = arith.constant 0 : i32
    %c0_i32_1 = arith.constant 0 : i32
    return %c0_i32, %c0_i32_0 : i32, i32
  }
  func.func @transform_5(%arg0: i32, %arg1: i32) -> (i32, i32) {
    %c0_i32 = arith.constant 0 : i32
    %c0_i32_0 = arith.constant 0 : i32
    %c0_i32_1 = arith.constant 0 : i32
    return %c0_i32, %c0_i32_0 : i32, i32
  }
  func.func @transform_6(%arg0: i32, %arg1: i32) -> (i32, i32) {
    %c0_i32 = arith.constant 0 : i32
    %c0_i32_0 = arith.constant 0 : i32
    %c0_i32_1 = arith.constant 0 : i32
    return %c0_i32, %c0_i32_0 : i32, i32
  }
  func.func @transform_7(%arg0: i32, %arg1: i32) -> (i32, i32) {
    %c0_i32 = arith.constant 0 : i32
    %c0_i32_0 = arith.constant 0 : i32
    return %c0_i32, %arg1 : i32, i32
  }
  func.func @transform_8(%arg0: i32, %arg1: i32) -> (i32, i32) {
    %c0_i32 = arith.constant 0 : i32
    %c0_i32_0 = arith.constant 0 : i32
    return %c0_i32, %arg1 : i32, i32
  }
  func.func @transform_9(%arg0: i32, %arg1: i32) -> (i32, i32) {
    %c0_i32 = arith.constant 0 : i32
    return %arg0, %arg1 : i32, i32
  }
}

</mosaic_0001>

<llo_original>
// kernel: tpu_custom_call.1
$region0: #{tpu_custom_call.1}
  #allocation0 [shape = 'u32[]', space=smem, size = 0x4, offset = 0x4, fixed_abs, tag = 'smem constant byte address 0x4 - core index']
  #allocation1 [shape = 'u32[144,128]{1,0:T(1,128)}', space=vmem, size = 0x12000, scoped, tag = 'internal scratch']
  #allocation2 [shape = 'bf16[8,32]{1,0:T(8,128)(2,1)}', space=vmem, size = 0x800, scoped, tag = 'scratch operand']
  %s0 = inlined_call_operand.vmem [shape: f32[16,32], index: 0, kind: input, shape index: {}]
  %s1 = inlined_call_operand.vmem [shape: bf16[32,96], index: 1, kind: input, shape index: {}]
  %s2 = inlined_call_operand.vmem [shape: f32[1,96], index: 2, kind: input, shape index: {}]
  %s3 = inlined_call_operand.vmem [shape: bf16[32,64], index: 3, kind: input, shape index: {}]
  %s4 = inlined_call_operand.vmem [shape: f32[1,64], index: 4, kind: input, shape index: {}]
  %s5 = inlined_call_operand.vmem [shape: bf16[64,32], index: 5, kind: input, shape index: {}]
  %s6 = inlined_call_operand.vmem [shape: f32[1,32], index: 6, kind: input, shape index: {}]
  %s7 = inlined_call_operand.hbm [shape: bf16[32,128], index: 7, kind: input, shape index: {}]
  %s8 = inlined_call_operand.vmem [shape: f32[1,128], index: 8, kind: input, shape index: {}]
  %s9 = inlined_call_operand.hbm [shape: f32[16,128], index: 9, kind: output, shape index: {}]
  %s10 = sld [smem:[#allocation0]]
  $region77: #{tpu_custom_call.1} parent=0
    _
  %s12 = ssub.s32 1, %s10
  %s13 = scalar_select 0, %s12, %s10
  $region1: #{tpu_custom_call.1} parent=0
    #allocation3 [shape = 'u8[8192]{0}', space=vmem, size = 0x2000, scoped, tag = 'input window, operand 7, single buffered']
    #allocation4 [shape = 's32[2]{0}', space=sflag, size = 0x8, scoped, tag = 'scoped memory for tpu_custom_call.1']
    #allocation5 [shape = 's32[2]{0}', space=sflag, size = 0x8, scoped, tag = 'scoped memory for tpu_custom_call.1']
    #allocation6 [shape = 'u8[8192]{0}', space=vmem, size = 0x2000, scoped, tag = 'output window, operand 0']
    %14 = vsyncpa [#allocation4], 0
    %15 = vsyncpa [#allocation5], 0
    %s16 = scalar_lea.sflag [#allocation5], 1
    %17 = vsyncpa %s16, 0
    loop: start=0, step=1, limit=4
    $region2: #{tpu_custom_call.1} parent=1 // loop_pre_header
      _
    $region3: #{tpu_custom_call.1} parent=1 // loop_header
      %s19 = sphi 0, %s23
      %p20 = scmp.ge.s32.totalorder %s19, 4
      %s26 = sphi 0, %s38
      %s27 = sphi 0, %s34
      %s28 = sphi 0, %s26
      %s29 = sphi 0, %s27
      %s30 = sphi 0, %s28
      %s31 = sphi 0, %s29
      %s41 = sphi 0, %s43
      %s44 = sphi 0, %s41
      %s45 = sphi 0, %s44
      %s61 = sphi 0, %s45
      %s65 = sphi 0, %s65
      %s67 = sphi 0, %s65
      %s68 = sphi 0, %s67
      %s82 = sphi 0, %s68
      %s86 = sphi 0, %s86
      %s88 = sphi 0, %s86
      %s89 = sphi 0, %s88
      %s103 = sphi 0, %s89
      %s107 = sphi 0, %s107
      %s109 = sphi 0, %s107
      %s110 = sphi 0, %s109
      %s124 = sphi 0, %s110
      %s128 = sphi 0, %s128
      %s130 = sphi 0, %s128
      %s131 = sphi 0, %s130
      %s145 = sphi 0, %s131
      %s149 = sphi 0, %s149
      %s151 = sphi 0, %s149
      %s152 = sphi 0, %s151
      %s166 = sphi 0, %s152
      %s170 = sphi 0, %s170
      %s172 = sphi 0, %s170
      %s173 = sphi 0, %s172
      %s187 = sphi 0, %s173
      %s193 = sphi 0, %s195
      %s196 = sphi 0, %s193
      %s197 = sphi 0, %s196
      %s213 = sphi 0, %s197
      %s219 = sphi 0, %s221
      %s222 = sphi 0, %s219
      %s223 = sphi 0, %s222
      %s239 = sphi 0, %s223
      %s247 = sphi 0, %s249
      %s250 = sphi 0, %s247
      %s251 = sphi 0, %s250
      %s267 = sphi 0, %s251
    $region4: #{tpu_custom_call.1} parent=1 // loop_header_branch
      %22 = sbr.rel (%p20) target = $region8
    $region5: #{tpu_custom_call.1} parent=1 // loop_body
      %s24 = ssub.s32 %s19, 1
      %s25 = ssub.s32 %s19, 2
      %s32 = sadd.s32 1, %s27
      %p33 = scmp.ge.s32.totalorder %s32, 1
      %s34 = scalar_select %p33, 0, %s32
      %s35 = sadd.s32 1, %s26
      %s36 = scalar_select %p33, %s35, %s26
      %p37 = scmp.ge.s32.totalorder %s36, 2
      %s38 = scalar_select %p37, 0, %s36
      %s39 = ssub.s32 %s26, %s38
      %p40 = scmp.eq.s32.totalorder %s39, 0
      %s42 = sadd.s32 %s41, 1
      %s43 = scalar_select %p40, %s41, %s42
      %p46 = pneg %p40
      %p47 = scmp.eq.s32.totalorder %s19, 1
      %p48 = por %p46, %p47
      %p49 = scmp.ne.s32.totalorder %s41, %s44
      %p50 = scmp.eq.s32.totalorder %s19, 0
      %p51 = por %p49, %p50
      %p52 = scmp.ne.s32.totalorder %s41, %s44
      %p53 = scmp.eq.s32.totalorder %s24, 1
      %p54 = por %p52, %p53
      %p55 = scmp.ne.s32.totalorder %s44, %s45
      %p56 = scmp.eq.s32.totalorder %s24, 0
      %p57 = por %p55, %p56
      %p58 = scmp.ne.s32.totalorder %s44, %s45
      %p59 = scmp.eq.s32.totalorder %s25, 1
      %p60 = por %p58, %p59
      %p62 = scmp.ne.s32.totalorder %s45, %s61
      %p63 = scmp.eq.s32.totalorder %s25, 0
      %p64 = por %p62, %p63
      %s66 = sadd.s32 %s65, 1
      %p69 = scmp.eq.s32.totalorder %s19, 1
      %p70 = scmp.ne.s32.totalorder %s65, %s67
      %p71 = scmp.eq.s32.totalorder %s19, 0
      %p72 = por %p70, %p71
      %p73 = scmp.ne.s32.totalorder %s65, %s67
      %p74 = scmp.eq.s32.totalorder %s24, 1
      %p75 = por %p73, %p74
      %p76 = scmp.ne.s32.totalorder %s67, %s68
      %p77 = scmp.eq.s32.totalorder %s24, 0
      %p78 = por %p76, %p77
      %p79 = scmp.ne.s32.totalorder %s67, %s68
      %p80 = scmp.eq.s32.totalorder %s25, 1
      %p81 = por %p79, %p80
      %p83 = scmp.ne.s32.totalorder %s68, %s82
      %p84 = scmp.eq.s32.totalorder %s25, 0
      %p85 = por %p83, %p84
      %s87 = sadd.s32 %s86, 1
      %p90 = scmp.eq.s32.totalorder %s19, 1
      %p91 = scmp.ne.s32.totalorder %s86, %s88
      %p92 = scmp.eq.s32.totalorder %s19, 0
      %p93 = por %p91, %p92
      %p94 = scmp.ne.s32.totalorder %s86, %s88
      %p95 = scmp.eq.s32.totalorder %s24, 1
      %p96 = por %p94, %p95
      %p97 = scmp.ne.s32.totalorder %s88, %s89
      %p98 = scmp.eq.s32.totalorder %s24, 0
      %p99 = por %p97, %p98
      %p100 = scmp.ne.s32.totalorder %s88, %s89
      %p101 = scmp.eq.s32.totalorder %s25, 1
      %p102 = por %p100, %p101
      %p104 = scmp.ne.s32.totalorder %s89, %s103
      %p105 = scmp.eq.s32.totalorder %s25, 0
      %p106 = por %p104, %p105
      %s108 = sadd.s32 %s107, 1
      %p111 = scmp.eq.s32.totalorder %s19, 1
      %p112 = scmp.ne.s32.totalorder %s107, %s109
      %p113 = scmp.eq.s32.totalorder %s19, 0
      %p114 = por %p112, %p113
      %p115 = scmp.ne.s32.totalorder %s107, %s109
      %p116 = scmp.eq.s32.totalorder %s24, 1
      %p117 = por %p115, %p116
      %p118 = scmp.ne.s32.totalorder %s109, %s110
      %p119 = scmp.eq.s32.totalorder %s24, 0
      %p120 = por %p118, %p119
      %p121 = scmp.ne.s32.totalorder %s109, %s110
      %p122 = scmp.eq.s32.totalorder %s25, 1
      %p123 = por %p121, %p122
      %p125 = scmp.ne.s32.totalorder %s110, %s124
      %p126 = scmp.eq.s32.totalorder %s25, 0
      %p127 = por %p125, %p126
      %s129 = sadd.s32 %s128, 1
      %p132 = scmp.eq.s32.totalorder %s19, 1
      %p133 = scmp.ne.s32.totalorder %s128, %s130
      %p134 = scmp.eq.s32.totalorder %s19, 0
      %p135 = por %p133, %p134
      %p136 = scmp.ne.s32.totalorder %s128, %s130
      %p137 = scmp.eq.s32.totalorder %s24, 1
      %p138 = por %p136, %p137
      %p139 = scmp.ne.s32.totalorder %s130, %s131
      %p140 = scmp.eq.s32.totalorder %s24, 0
      %p141 = por %p139, %p140
      %p142 = scmp.ne.s32.totalorder %s130, %s131
      %p143 = scmp.eq.s32.totalorder %s25, 1
      %p144 = por %p142, %p143
      %p146 = scmp.ne.s32.totalorder %s131, %s145
      %p147 = scmp.eq.s32.totalorder %s25, 0
      %p148 = por %p146, %p147
      %s150 = sadd.s32 %s149, 1
      %p153 = scmp.eq.s32.totalorder %s19, 1
      %p154 = scmp.ne.s32.totalorder %s149, %s151
      %p155 = scmp.eq.s32.totalorder %s19, 0
      %p156 = por %p154, %p155
      %p157 = scmp.ne.s32.totalorder %s149, %s151
      %p158 = scmp.eq.s32.totalorder %s24, 1
      %p159 = por %p157, %p158
      %p160 = scmp.ne.s32.totalorder %s151, %s152
      %p161 = scmp.eq.s32.totalorder %s24, 0
      %p162 = por %p160, %p161
      %p163 = scmp.ne.s32.totalorder %s151, %s152
      %p164 = scmp.eq.s32.totalorder %s25, 1
      %p165 = por %p163, %p164
      %p167 = scmp.ne.s32.totalorder %s152, %s166
      %p168 = scmp.eq.s32.totalorder %s25, 0
      %p169 = por %p167, %p168
      %s171 = sadd.s32 %s170, 1
      %p174 = scmp.eq.s32.totalorder %s19, 1
      %p175 = scmp.ne.s32.totalorder %s170, %s172
      %p176 = scmp.eq.s32.totalorder %s19, 0
      %p177 = por %p175, %p176
      %p178 = scmp.ne.s32.totalorder %s170, %s172
      %p179 = scmp.eq.s32.totalorder %s24, 1
      %p180 = por %p178, %p179
      %p181 = scmp.ne.s32.totalorder %s172, %s173
      %p182 = scmp.eq.s32.totalorder %s24, 0
      %p183 = por %p181, %p182
      %p184 = scmp.ne.s32.totalorder %s172, %s173
      %p185 = scmp.eq.s32.totalorder %s25, 1
      %p186 = por %p184, %p185
      %p188 = scmp.ne.s32.totalorder %s173, %s187
      %p189 = scmp.eq.s32.totalorder %s25, 0
      %p190 = por %p188, %p189
      %s191 = ssub.s32 %s27, %s34
      %p192 = scmp.eq.s32.totalorder %s191, 0
      %s194 = sadd.s32 %s193, 1
      %s195 = scalar_select %p192, %s193, %s194
      %p198 = pneg %p192
      %p199 = scmp.eq.s32.totalorder %s19, 1
      %p200 = por %p198, %p199
      %p201 = scmp.ne.s32.totalorder %s193, %s196
      %p202 = scmp.eq.s32.totalorder %s19, 0
      %p203 = por %p201, %p202
      %p204 = scmp.ne.s32.totalorder %s193, %s196
      %p205 = scmp.eq.s32.totalorder %s24, 1
      %p206 = por %p204, %p205
      %p207 = scmp.ne.s32.totalorder %s196, %s197
      %p208 = scmp.eq.s32.totalorder %s24, 0
      %p209 = por %p207, %p208
      %p210 = scmp.ne.s32.totalorder %s196, %s197
      %p211 = scmp.eq.s32.totalorder %s25, 1
      %p212 = por %p210, %p211
      %p214 = scmp.ne.s32.totalorder %s197, %s213
      %p215 = scmp.eq.s32.totalorder %s25, 0
      %p216 = por %p214, %p215
      %s217 = ssub.s32 %s27, %s34
      %p218 = scmp.eq.s32.totalorder %s217, 0
      %s220 = sadd.s32 %s219, 1
      %s221 = scalar_select %p218, %s219, %s220
      %p224 = pneg %p218
      %p225 = scmp.eq.s32.totalorder %s19, 1
      %p226 = por %p224, %p225
      %p227 = scmp.ne.s32.totalorder %s219, %s222
      %p228 = scmp.eq.s32.totalorder %s19, 0
      %p229 = por %p227, %p228
      %p230 = scmp.ne.s32.totalorder %s219, %s222
      %p231 = scmp.eq.s32.totalorder %s24, 1
      %p232 = por %p230, %p231
      %p233 = scmp.ne.s32.totalorder %s222, %s223
      %p234 = scmp.eq.s32.totalorder %s24, 0
      %p235 = por %p233, %p234
      %p236 = scmp.ne.s32.totalorder %s222, %s223
      %p237 = scmp.eq.s32.totalorder %s25, 1
      %p238 = por %p236, %p237
      %p240 = scmp.ne.s32.totalorder %s223, %s239
      %p241 = scmp.eq.s32.totalorder %s25, 0
      %p242 = por %p240, %p241
      %s243 = ssub.s32 %s26, %s38
      %s244 = ssub.s32 %s27, %s34
      %s245 = sor.u32 %s243, %s244
      %p246 = scmp.eq.s32.totalorder %s245, 0
      %s248 = sadd.s32 %s247, 1
      %s249 = scalar_select %p246, %s247, %s248
      %p252 = pneg %p246
      %p253 = scmp.eq.s32.totalorder %s19, 1
      %p254 = por %p252, %p253
      %p255 = scmp.ne.s32.totalorder %s247, %s250
      %p256 = scmp.eq.s32.totalorder %s19, 0
      %p257 = por %p255, %p256
      %p258 = scmp.ne.s32.totalorder %s247, %s250
      %p259 = scmp.eq.s32.totalorder %s24, 1
      %p260 = por %p258, %p259
      %p261 = scmp.ne.s32.totalorder %s250, %s251
      %p262 = scmp.eq.s32.totalorder %s24, 0
      %p263 = por %p261, %p262
      %p264 = scmp.ne.s32.totalorder %s250, %s251
      %p265 = scmp.eq.s32.totalorder %s25, 1
      %p266 = por %p264, %p265
      %p268 = scmp.ne.s32.totalorder %s251, %s267
      %p269 = scmp.eq.s32.totalorder %s25, 0
      %p270 = por %p268, %p269
      %p271 = scmp.le.s32.totalorder 1, %s19
      %p272 = scmp.lt.s32.totalorder %s19, 3
      %p273 = pnand %p271, %p272
      %p274 = pneg %p273
      // Predicated region
      $region9: #{tpu_custom_call.1} parent=5 // pred_check
        _
      $region10: #{tpu_custom_call.1} parent=5 // pred_check_branch
        %276 = sbr.rel (%p273) target = $region12
      $region11: #{tpu_custom_call.1} parent=5 // pred_region
        %s277 = ssub.s32 %s19, 1
        // Predicated region
        $region13: #{tpu_custom_call.1} parent=11 // pred_check
          %p278 = pneg %p78
        $region14: #{tpu_custom_call.1} parent=11 // pred_check_branch
          %280 = sbr.rel (%p278) target = $region16
        $region15: #{tpu_custom_call.1} parent=11 // pred_region
          _
        $region16: #{tpu_custom_call.1} parent=11 // pred_fallthru
          _
        // Predicated region
        $region17: #{tpu_custom_call.1} parent=11 // pred_check
          %p281 = pneg %p99
        $region18: #{tpu_custom_call.1} parent=11 // pred_check_branch
          %283 = sbr.rel (%p281) target = $region20
        $region19: #{tpu_custom_call.1} parent=11 // pred_region
          _
        $region20: #{tpu_custom_call.1} parent=11 // pred_fallthru
          _
        // Predicated region
        $region21: #{tpu_custom_call.1} parent=11 // pred_check
          %p284 = pneg %p120
        $region22: #{tpu_custom_call.1} parent=11 // pred_check_branch
          %286 = sbr.rel (%p284) target = $region24
        $region23: #{tpu_custom_call.1} parent=11 // pred_region
          _
        $region24: #{tpu_custom_call.1} parent=11 // pred_fallthru
          _
        // Predicated region
        $region25: #{tpu_custom_call.1} parent=11 // pred_check
          %p287 = pneg %p141
        $region26: #{tpu_custom_call.1} parent=11 // pred_check_branch
          %289 = sbr.rel (%p287) target = $region28
        $region27: #{tpu_custom_call.1} parent=11 // pred_region
          _
        $region28: #{tpu_custom_call.1} parent=11 // pred_fallthru
          _
        // Predicated region
        $region29: #{tpu_custom_call.1} parent=11 // pred_check
          %p290 = pneg %p162
        $region30: #{tpu_custom_call.1} parent=11 // pred_check_branch
          %292 = sbr.rel (%p290) target = $region32
        $region31: #{tpu_custom_call.1} parent=11 // pred_region
          _
        $region32: #{tpu_custom_call.1} parent=11 // pred_fallthru
          _
        // Predicated region
        $region33: #{tpu_custom_call.1} parent=11 // pred_check
          %p293 = pneg %p183
        $region34: #{tpu_custom_call.1} parent=11 // pred_check_branch
          %295 = sbr.rel (%p293) target = $region36
        $region35: #{tpu_custom_call.1} parent=11 // pred_region
          _
        $region36: #{tpu_custom_call.1} parent=11 // pred_fallthru
          _
        // Predicated region
        $region37: #{tpu_custom_call.1} parent=11 // pred_check
          %p296 = pneg %p209
        $region38: #{tpu_custom_call.1} parent=11 // pred_check_branch
          %298 = sbr.rel (%p296) target = $region40
        $region39: #{tpu_custom_call.1} parent=11 // pred_region
          %s300 = ssub.s32 256, 256
          %301 = vsyncadd [#allocation4], %s300
          %s302 = smul.addr %s29, 64
          %s303 = scalar_lea.hbm %s7, %s302
          %s304 = sshll.u32 [#allocation3], 4
          %s305 = int_to_ptr.vmem [resolvable:$true] %s304
          %310 = dma.hbm_to_vmem [thread:$0]  %s303, 256, %s305, [#allocation4], 64, 64, 4
        $region40: #{tpu_custom_call.1} parent=11 // pred_fallthru
          _
        // Predicated region
        $region41: #{tpu_custom_call.1} parent=11 // pred_check
          %p311 = pneg %p235
        $region42: #{tpu_custom_call.1} parent=11 // pred_check_branch
          %313 = sbr.rel (%p311) target = $region44
        $region43: #{tpu_custom_call.1} parent=11 // pred_region
          %p314 = scmp.lt.s32.totalorder %s29, 0
          %s315 = scalar_select %p314, %s29, 0
          %s316 = scalar_lea.vmem %s8, %s315
        $region44: #{tpu_custom_call.1} parent=11 // pred_fallthru
          _
      $region12: #{tpu_custom_call.1} parent=5 // pred_fallthru
        _
      %p317 = scmp.lt.s32.totalorder %s19, 2
      // Predicated region
      $region45: #{tpu_custom_call.1} parent=5 // pred_check
        %p318 = pneg %p317
      $region46: #{tpu_custom_call.1} parent=5 // pred_check_branch
        %320 = sbr.rel (%p318) target = $region48
      $region47: #{tpu_custom_call.1} parent=5 // pred_region
        // Predicated region
        $region49: #{tpu_custom_call.1} parent=47 // pred_check
          %p321 = pneg %p51
        $region50: #{tpu_custom_call.1} parent=47 // pred_check_branch
          %323 = sbr.rel (%p321) target = $region52
        $region51: #{tpu_custom_call.1} parent=47 // pred_region
          %p324 = scmp.lt.s32.totalorder %s26, 1
          %s325 = scalar_select %p324, %s26, 1
          %s326 = smul.addr %s325, 8
          %s327 = scalar_lea.vmem %s0, %s326
        $region52: #{tpu_custom_call.1} parent=47 // pred_fallthru
          _
      $region48: #{tpu_custom_call.1} parent=5 // pred_fallthru
        _
      %p328 = scmp.le.s32.totalorder 1, %s19
      %p329 = scmp.lt.s32.totalorder %s19, 3
      %p330 = pnand %p328, %p329
      %p331 = pneg %p330
      // Predicated region
      $region53: #{tpu_custom_call.1} parent=5 // pred_check
        _
      $region54: #{tpu_custom_call.1} parent=5 // pred_check_branch
        %333 = sbr.rel (%p330) target = $region56
      $region55: #{tpu_custom_call.1} parent=5 // pred_region
        %s334 = ssub.s32 %s19, 1
        // Predicated region
        $region57: #{tpu_custom_call.1} parent=55 // pred_check
          %p335 = pneg %p209
        $region58: #{tpu_custom_call.1} parent=55 // pred_check_branch
          %337 = sbr.rel (%p335) target = $region60
        $region59: #{tpu_custom_call.1} parent=55 // pred_region
          %338 = dma.done [#allocation4], 256
        $region60: #{tpu_custom_call.1} parent=55 // pred_fallthru
          _
        %p339 = scmp.lt.s32.totalorder %s28, 1
        %s340 = scalar_select %p339, %s28, 1
        %s341 = smul.addr %s340, 8
        %s342 = scalar_lea.vmem %s0, %s341
        %p343 = pneg %p57
        %p344 = pneg %p54
        %p345 = pneg %p78
        %p346 = pneg %p75
        %p347 = pneg %p99
        %p348 = pneg %p96
        %p349 = pneg %p120
        %p350 = pneg %p117
        %p351 = pneg %p141
        %p352 = pneg %p138
        %p353 = pneg %p162
        %p354 = pneg %p159
        %p355 = pneg %p183
        %p356 = pneg %p180
        %p357 = pneg %p209
        %p358 = pneg %p206
        %p359 = scmp.lt.s32.totalorder %s29, 0
        %s360 = scalar_select %p359, %s29, 0
        %s361 = scalar_lea.vmem %s8, %s360
        %p362 = pneg %p235
        %p363 = pneg %p232
        %p364 = pneg %p263
        %p365 = pneg %p260
        %s366 = sand.u32 %s250, 1
        %s367 = scalar_lea.sflag [#allocation5], %s366
        %s368 = sand.u32 %s250, 1
        %s369 = smul.addr %s368, 8
        %s370 = scalar_lea.vmem [#allocation6], %s369
        %p371 = scmp.lt.s32.totalorder %s28, 1
        %s372 = scalar_select %p371, %s28, 1
        %s373 = smul.addr %s372, 8
        %s374 = scalar_lea.vmem %s0, %s373
        %p375 = scmp.lt.s32.totalorder %s29, 0
        %s376 = scalar_select %p375, %s29, 0
        %s377 = scalar_lea.vmem %s8, %s376
        %p379 = scmp.eq.s32.totalorder %s29, 0
        // Predicated region
        $region61: #{tpu_custom_call.1} parent=55 // pred_check
          %p380 = pneg %p379
        $region62: #{tpu_custom_call.1} parent=55 // pred_check_branch
          %382 = sbr.rel (%p380) target = $region64
        $region63: #{tpu_custom_call.1} parent=55 // pred_region
          %v383 = vld [vmem:[%s374] sm:$0xff]
          %v384 = vpack.c.bf16 %v383, %v383
          %v385 = vld [vmem:[%s1] sm:$0xf]
          %v386 = vld [vmem:[%s1 + $0x4] sm:$0xf]
          %v387 = vld [vmem:[%s1 + $0x8] sm:$0xf]
          %v388 = vld [vmem:[%s1 + $0xc] sm:$0xf]
          %v389 = vld [vmem:[%s2] sm:$0x1]
          %v391 = vlaneseq
          %v392 = vshrl.u32 %v391, 7
          %v393 = vsub.s32 0, %v392
          %v394 = vrot.slane %v389, %v393
          %v400 = vunpack.c.l.b16 %v385
          %v401 = vunpack.c.l.b16 %v386
          %v402 = vunpack.c.l.b16 %v387
          %v403 = vunpack.c.l.b16 %v388
          %v404 = vpack.c.b16 %v401, %v400
          %v405 = vpack.c.b16 %v403, %v402
          %vm408 = vcmask 261120
          %v410 = vsel %vm408, %v384, 0
          %412 = vmatprep.subr.bf16.mxu0 0
          %413 = vmatpush1.bf16.msra.mxu0 0
          %414 = vmatprep.subr.bf16.mxu0 0
          %415 = vmatpush1.bf16.msra.mxu0 0
          %416 = vmatprep.subr.bf16.mxu0 0
          %417 = vmatpush1.bf16.msra.mxu0 0
          %418 = vmatprep.subr.bf16.mxu0 0
          %419 = vmatpush1.bf16.msra.mxu0 0
          %420 = vmatprep.subr.bf16.mxu0 0
          %421 = vmatpush1.bf16.msra.mxu0 0
          %422 = vmatprep.subr.bf16.mxu0 0
          %423 = vmatpush1.bf16.msra.mxu0 0
          %424 = vmatprep.subr.bf16.mxu0 0
          %425 = vmatpush1.bf16.msra.mxu0 %v405
          %426 = vmatprep.subr.bf16.mxu0 0
          %427 = vmatpush1.bf16.msra.mxu0 %v404
          %428 = vmatprep.subr.bf16.mxu0 0
          %429 = vmatpush2.bf16.msra.mxu0 0
          %430 = vmatprep.subr.bf16.mxu0 0
          %431 = vmatpush2.bf16.msra.mxu0 0
          %432 = vmatprep.subr.bf16.mxu0 0
          %433 = vmatpush2.bf16.msra.mxu0 0
          %434 = vmatprep.subr.bf16.mxu0 0
          %435 = vmatpush2.bf16.msra.mxu0 0
          %436 = vmatprep.subr.bf16.mxu0 0
          %437 = vmatpush2.bf16.msra.mxu0 0
          %438 = vmatprep.subr.bf16.mxu0 0
          %439 = vmatpush2.bf16.msra.mxu0 0
          %440 = vmatprep.subr.bf16.mxu0 0
          %441 = vmatpush2.bf16.msra.mxu0 0
          %442 = vmatprep.subr.bf16.mxu0 0
          %443 = vmatpush2.bf16.msra.mxu0 0
          %444 = vmatprep.mubr.bf16.mxu0 0
          %445 = vmatmul.mubr.bf16.gmra.mxu0 %v410
          %v446 = vpop.f32.mrf.mxu0
          %v447 = vadd.f32 %v394, %v446
          %v448 = vpop.f32.mrf.mxu0
          %v449 = vpop.f32.mrf.mxu0
          %v450 = vpop.f32.mrf.mxu0
          %451 = vdwg.mxu0
          %v452 = vpack.c.bf16 %v447, %v447
          %454 = vrot.lane.b32.xlu0 %v452, 96
          %v455 = vpop.permute.xlu0 %454
          %vm456 = vcmask 64512
          %v458 = vsel %vm456, %v452, 0
          %v461 = vsel %vm456, %v455, 0
          %463 = vmatprep.subr.bf16.mxu0 0
          %464 = vmatpush1.bf16.xpose.msra.mxu0 0
          %465 = vmatprep.subr.bf16.mxu0 0
          %466 = vmatpush1.bf16.xpose.msra.mxu0 0
          %467 = vmatprep.subr.bf16.mxu0 0
          %468 = vmatpush1.bf16.xpose.msra.mxu0 0
          %469 = vmatprep.subr.bf16.mxu0 0
          %470 = vmatpush1.bf16.xpose.msra.mxu0 0
          %471 = vmatprep.subr.bf16.mxu0 0
          %472 = vmatpush1.bf16.xpose.msra.mxu0 0
          %473 = vmatprep.subr.bf16.mxu0 0
          %474 = vmatpush1.bf16.xpose.msra.mxu0 0
          %475 = vmatprep.subr.bf16.mxu0 0
          %476 = vmatpush1.bf16.xpose.msra.mxu0 0
          %477 = vmatprep.subr.bf16.mxu0 0
          %478 = vmatpush1.bf16.xpose.msra.mxu0 %v461
          %479 = vmatprep.subr.bf16.mxu0 0
          %480 = vmatpush2.bf16.xpose.msra.mxu0 0
          %481 = vmatprep.subr.bf16.mxu0 0
          %482 = vmatpush2.bf16.xpose.msra.mxu0 0
          %483 = vmatprep.subr.bf16.mxu0 0
          %484 = vmatpush2.bf16.xpose.msra.mxu0 0
          %485 = vmatprep.subr.bf16.mxu0 0
          %486 = vmatpush2.bf16.xpose.msra.mxu0 0
          %487 = vmatprep.subr.bf16.mxu0 0
          %488 = vmatpush2.bf16.xpose.msra.mxu0 0
          %489 = vmatprep.subr.bf16.mxu0 0
          %490 = vmatpush2.bf16.xpose.msra.mxu0 0
          %491 = vmatprep.subr.bf16.mxu0 0
          %492 = vmatpush2.bf16.xpose.msra.mxu0 0
          %493 = vmatprep.subr.bf16.mxu0 0
          %494 = vmatpush2.bf16.xpose.msra.mxu0 0
          %495 = vmatprep.mubr.bf16.mxu0 0
          %496 = vmatmul.mubr.bf16.gmra.mxu0 %v458
          %v497 = vpop.f32.mrf.mxu0
          %v498 = vadd.f32 0.0, %v497
          %v499 = vpop.f32.mrf.mxu0
          %v500 = vpop.f32.mrf.mxu0
          %v501 = vpop.f32.mrf.mxu0
          %502 = vdwg.mxu0
          %v503 = vmul.f32 %v498, 0.35355338
          %v504 = vsel %vm456, %v503, -inf
          %505 = vmax.xlane.f32.xlu0 %v504
          %v506 = vpop.xlane.xlu0 %505
          %v507 = vsub.f32 %v503, %v506
          %v508 = vmul.f32 %v507, 1.442695
          %v509 = vpow.pop %v508
          %v510 = vsel %vm456, %v509, 0.0
          %511 = vadd.xlane.f32.xlu0 %v510
          %v512 = vpop.xlane.xlu0 %511
          %v513 = vrcp.pop %v512
          %v514 = vmul.f32 %v509, %v513
          %v515 = vpack.c.bf16 %v514, %v514
          %516 = vrot.lane.b32.xlu0 %v452, 64
          %v517 = vpop.permute.xlu0 %516
          %v519 = vsel %vm456, %v515, 0
          %vm521 = vcmask 1043456
          %v523 = vsel %vm521, %v517, 0
          %525 = vmatprep.subr.bf16.mxu0 0
          %526 = vmatpush1.bf16.msra.mxu0 0
          %527 = vmatprep.subr.bf16.mxu0 0
          %528 = vmatpush1.bf16.msra.mxu0 0
          %529 = vmatprep.subr.bf16.mxu0 0
          %530 = vmatpush1.bf16.msra.mxu0 0
          %531 = vmatprep.subr.bf16.mxu0 0
          %532 = vmatpush1.bf16.msra.mxu0 0
          %533 = vmatprep.subr.bf16.mxu0 0
          %534 = vmatpush1.bf16.msra.mxu0 0
          %535 = vmatprep.subr.bf16.mxu0 0
          %536 = vmatpush1.bf16.msra.mxu0 0
          %537 = vmatprep.subr.bf16.mxu0 0
          %538 = vmatpush1.bf16.msra.mxu0 0
          %539 = vmatprep.subr.bf16.mxu0 0
          %540 = vmatpush1.bf16.msra.mxu0 %v523
          %541 = vmatprep.subr.bf16.mxu0 0
          %542 = vmatpush2.bf16.msra.mxu0 0
          %543 = vmatprep.subr.bf16.mxu0 0
          %544 = vmatpush2.bf16.msra.mxu0 0
          %545 = vmatprep.subr.bf16.mxu0 0
          %546 = vmatpush2.bf16.msra.mxu0 0
          %547 = vmatprep.subr.bf16.mxu0 0
          %548 = vmatpush2.bf16.msra.mxu0 0
          %549 = vmatprep.subr.bf16.mxu0 0
          %550 = vmatpush2.bf16.msra.mxu0 0
          %551 = vmatprep.subr.bf16.mxu0 0
          %552 = vmatpush2.bf16.msra.mxu0 0
          %553 = vmatprep.subr.bf16.mxu0 0
          %554 = vmatpush2.bf16.msra.mxu0 0
          %555 = vmatprep.subr.bf16.mxu0 0
          %556 = vmatpush2.bf16.msra.mxu0 0
          %557 = vmatprep.mubr.bf16.mxu0 0
          %558 = vmatmul.mubr.bf16.gmra.mxu0 %v519
          %v559 = vpop.f32.mrf.mxu0
          %v560 = vadd.f32 0.0, %v559
          %v561 = vpop.f32.mrf.mxu0
          %v562 = vpop.f32.mrf.mxu0
          %v563 = vpop.f32.mrf.mxu0
          %564 = vdwg.mxu0
          %565 = vrot.lane.b32.xlu0 %v452, 120
          %v566 = vpop.permute.xlu0 %565
          %567 = vrot.lane.b32.xlu0 %v452, 88
          %v568 = vpop.permute.xlu0 %567
          %v570 = vsel %vm456, %v566, 0
          %v573 = vsel %vm456, %v568, 0
          %575 = vmatprep.subr.bf16.mxu0 0
          %576 = vmatpush1.bf16.xpose.msra.mxu0 0
          %577 = vmatprep.subr.bf16.mxu0 0
          %578 = vmatpush1.bf16.xpose.msra.mxu0 0
          %579 = vmatprep.subr.bf16.mxu0 0
          %580 = vmatpush1.bf16.xpose.msra.mxu0 0
          %581 = vmatprep.subr.bf16.mxu0 0
          %582 = vmatpush1.bf16.xpose.msra.mxu0 0
          %583 = vmatprep.subr.bf16.mxu0 0
          %584 = vmatpush1.bf16.xpose.msra.mxu0 0
          %585 = vmatprep.subr.bf16.mxu0 0
          %586 = vmatpush1.bf16.xpose.msra.mxu0 0
          %587 = vmatprep.subr.bf16.mxu0 0
          %588 = vmatpush1.bf16.xpose.msra.mxu0 0
          %589 = vmatprep.subr.bf16.mxu0 0
          %590 = vmatpush1.bf16.xpose.msra.mxu0 %v573
          %591 = vmatprep.subr.bf16.mxu0 0
          %592 = vmatpush2.bf16.xpose.msra.mxu0 0
          %593 = vmatprep.subr.bf16.mxu0 0
          %594 = vmatpush2.bf16.xpose.msra.mxu0 0
          %595 = vmatprep.subr.bf16.mxu0 0
          %596 = vmatpush2.bf16.xpose.msra.mxu0 0
          %597 = vmatprep.subr.bf16.mxu0 0
          %598 = vmatpush2.bf16.xpose.msra.mxu0 0
          %599 = vmatprep.subr.bf16.mxu0 0
          %600 = vmatpush2.bf16.xpose.msra.mxu0 0
          %601 = vmatprep.subr.bf16.mxu0 0
          %602 = vmatpush2.bf16.xpose.msra.mxu0 0
          %603 = vmatprep.subr.bf16.mxu0 0
          %604 = vmatpush2.bf16.xpose.msra.mxu0 0
          %605 = vmatprep.subr.bf16.mxu0 0
          %606 = vmatpush2.bf16.xpose.msra.mxu0 0
          %607 = vmatprep.mubr.bf16.mxu0 0
          %608 = vmatmul.mubr.bf16.gmra.mxu0 %v570
          %v609 = vpop.f32.mrf.mxu0
          %v610 = vadd.f32 0.0, %v609
          %v611 = vpop.f32.mrf.mxu0
          %v612 = vpop.f32.mrf.mxu0
          %v613 = vpop.f32.mrf.mxu0
          %614 = vdwg.mxu0
          %v615 = vmul.f32 %v610, 0.35355338
          %v616 = vsel %vm456, %v615, -inf
          %617 = vmax.xlane.f32.xlu0 %v616
          %v618 = vpop.xlane.xlu0 %617
          %v619 = vsub.f32 %v615, %v618
          %v620 = vmul.f32 %v619, 1.442695
          %v621 = vpow.pop %v620
          %v622 = vsel %vm456, %v621, 0.0
          %623 = vadd.xlane.f32.xlu0 %v622
          %v624 = vpop.xlane.xlu0 %623
          %v625 = vrcp.pop %v624
          %v626 = vmul.f32 %v621, %v625
          %v627 = vpack.c.bf16 %v626, %v626
          %628 = vrot.lane.b32.xlu0 %v452, 56
          %v629 = vpop.permute.xlu0 %628
          %v631 = vsel %vm456, %v627, 0
          %v634 = vsel %vm521, %v629, 0
          %636 = vmatprep.subr.bf16.mxu0 0
          %637 = vmatpush1.bf16.msra.mxu0 0
          %638 = vmatprep.subr.bf16.mxu0 0
          %639 = vmatpush1.bf16.msra.mxu0 0
          %640 = vmatprep.subr.bf16.mxu0 0
          %641 = vmatpush1.bf16.msra.mxu0 0
          %642 = vmatprep.subr.bf16.mxu0 0
          %643 = vmatpush1.bf16.msra.mxu0 0
          %644 = vmatprep.subr.bf16.mxu0 0
          %645 = vmatpush1.bf16.msra.mxu0 0
          %646 = vmatprep.subr.bf16.mxu0 0
          %647 = vmatpush1.bf16.msra.mxu0 0
          %648 = vmatprep.subr.bf16.mxu0 0
          %649 = vmatpush1.bf16.msra.mxu0 0
          %650 = vmatprep.subr.bf16.mxu0 0
          %651 = vmatpush1.bf16.msra.mxu0 %v634
          %652 = vmatprep.subr.bf16.mxu0 0
          %653 = vmatpush2.bf16.msra.mxu0 0
          %654 = vmatprep.subr.bf16.mxu0 0
          %655 = vmatpush2.bf16.msra.mxu0 0
          %656 = vmatprep.subr.bf16.mxu0 0
          %657 = vmatpush2.bf16.msra.mxu0 0
          %658 = vmatprep.subr.bf16.mxu0 0
          %659 = vmatpush2.bf16.msra.mxu0 0
          %660 = vmatprep.subr.bf16.mxu0 0
          %661 = vmatpush2.bf16.msra.mxu0 0
          %662 = vmatprep.subr.bf16.mxu0 0
          %663 = vmatpush2.bf16.msra.mxu0 0
          %664 = vmatprep.subr.bf16.mxu0 0
          %665 = vmatpush2.bf16.msra.mxu0 0
          %666 = vmatprep.subr.bf16.mxu0 0
          %667 = vmatpush2.bf16.msra.mxu0 0
          %668 = vmatprep.mubr.bf16.mxu0 0
          %669 = vmatmul.mubr.bf16.gmra.mxu0 %v631
          %v670 = vpop.f32.mrf.mxu0
          %v671 = vadd.f32 0.0, %v670
          %v672 = vpop.f32.mrf.mxu0
          %v673 = vpop.f32.mrf.mxu0
          %v674 = vpop.f32.mrf.mxu0
          %675 = vdwg.mxu0
          %676 = vrot.lane.b32.xlu0 %v452, 112
          %v677 = vpop.permute.xlu0 %676
          %678 = vrot.lane.b32.xlu0 %v452, 80
          %v679 = vpop.permute.xlu0 %678
          %v681 = vsel %vm456, %v677, 0
          %v684 = vsel %vm456, %v679, 0
          %686 = vmatprep.subr.bf16.mxu0 0
          %687 = vmatpush1.bf16.xpose.msra.mxu0 0
          %688 = vmatprep.subr.bf16.mxu0 0
          %689 = vmatpush1.bf16.xpose.msra.mxu0 0
          %690 = vmatprep.subr.bf16.mxu0 0
          %691 = vmatpush1.bf16.xpose.msra.mxu0 0
          %692 = vmatprep.subr.bf16.mxu0 0
          %693 = vmatpush1.bf16.xpose.msra.mxu0 0
          %694 = vmatprep.subr.bf16.mxu0 0
          %695 = vmatpush1.bf16.xpose.msra.mxu0 0
          %696 = vmatprep.subr.bf16.mxu0 0
          %697 = vmatpush1.bf16.xpose.msra.mxu0 0
          %698 = vmatprep.subr.bf16.mxu0 0
          %699 = vmatpush1.bf16.xpose.msra.mxu0 0
          %700 = vmatprep.subr.bf16.mxu0 0
          %701 = vmatpush1.bf16.xpose.msra.mxu0 %v684
          %702 = vmatprep.subr.bf16.mxu0 0
          %703 = vmatpush2.bf16.xpose.msra.mxu0 0
          %704 = vmatprep.subr.bf16.mxu0 0
          %705 = vmatpush2.bf16.xpose.msra.mxu0 0
          %706 = vmatprep.subr.bf16.mxu0 0
          %707 = vmatpush2.bf16.xpose.msra.mxu0 0
          %708 = vmatprep.subr.bf16.mxu0 0
          %709 = vmatpush2.bf16.xpose.msra.mxu0 0
          %710 = vmatprep.subr.bf16.mxu0 0
          %711 = vmatpush2.bf16.xpose.msra.mxu0 0
          %712 = vmatprep.subr.bf16.mxu0 0
          %713 = vmatpush2.bf16.xpose.msra.mxu0 0
          %714 = vmatprep.subr.bf16.mxu0 0
          %715 = vmatpush2.bf16.xpose.msra.mxu0 0
          %716 = vmatprep.subr.bf16.mxu0 0
          %717 = vmatpush2.bf16.xpose.msra.mxu0 0
          %718 = vmatprep.mubr.bf16.mxu0 0
          %719 = vmatmul.mubr.bf16.gmra.mxu0 %v681
          %v720 = vpop.f32.mrf.mxu0
          %v721 = vadd.f32 0.0, %v720
          %v722 = vpop.f32.mrf.mxu0
          %v723 = vpop.f32.mrf.mxu0
          %v724 = vpop.f32.mrf.mxu0
          %725 = vdwg.mxu0
          %v726 = vmul.f32 %v721, 0.35355338
          %v727 = vsel %vm456, %v726, -inf
          %728 = vmax.xlane.f32.xlu0 %v727
          %v729 = vpop.xlane.xlu0 %728
          %v730 = vsub.f32 %v726, %v729
          %v731 = vmul.f32 %v730, 1.442695
          %v732 = vpow.pop %v731
          %v733 = vsel %vm456, %v732, 0.0
          %734 = vadd.xlane.f32.xlu0 %v733
          %v735 = vpop.xlane.xlu0 %734
          %v736 = vrcp.pop %v735
          %v737 = vmul.f32 %v732, %v736
          %v738 = vpack.c.bf16 %v737, %v737
          %739 = vrot.lane.b32.xlu0 %v452, 48
          %v740 = vpop.permute.xlu0 %739
          %v742 = vsel %vm456, %v738, 0
          %v745 = vsel %vm521, %v740, 0
          %747 = vmatprep.subr.bf16.mxu0 0
          %748 = vmatpush1.bf16.msra.mxu0 0
          %749 = vmatprep.subr.bf16.mxu0 0
          %750 = vmatpush1.bf16.msra.mxu0 0
          %751 = vmatprep.subr.bf16.mxu0 0
          %752 = vmatpush1.bf16.msra.mxu0 0
          %753 = vmatprep.subr.bf16.mxu0 0
          %754 = vmatpush1.bf16.msra.mxu0 0
          %755 = vmatprep.subr.bf16.mxu0 0
          %756 = vmatpush1.bf16.msra.mxu0 0
          %757 = vmatprep.subr.bf16.mxu0 0
          %758 = vmatpush1.bf16.msra.mxu0 0
          %759 = vmatprep.subr.bf16.mxu0 0
          %760 = vmatpush1.bf16.msra.mxu0 0
          %761 = vmatprep.subr.bf16.mxu0 0
          %762 = vmatpush1.bf16.msra.mxu0 %v745
          %763 = vmatprep.subr.bf16.mxu0 0
          %764 = vmatpush2.bf16.msra.mxu0 0
          %765 = vmatprep.subr.bf16.mxu0 0
          %766 = vmatpush2.bf16.msra.mxu0 0
          %767 = vmatprep.subr.bf16.mxu0 0
          %768 = vmatpush2.bf16.msra.mxu0 0
          %769 = vmatprep.subr.bf16.mxu0 0
          %770 = vmatpush2.bf16.msra.mxu0 0
          %771 = vmatprep.subr.bf16.mxu0 0
          %772 = vmatpush2.bf16.msra.mxu0 0
          %773 = vmatprep.subr.bf16.mxu0 0
          %774 = vmatpush2.bf16.msra.mxu0 0
          %775 = vmatprep.subr.bf16.mxu0 0
          %776 = vmatpush2.bf16.msra.mxu0 0
          %777 = vmatprep.subr.bf16.mxu0 0
          %778 = vmatpush2.bf16.msra.mxu0 0
          %779 = vmatprep.mubr.bf16.mxu0 0
          %780 = vmatmul.mubr.bf16.gmra.mxu0 %v742
          %v781 = vpop.f32.mrf.mxu0
          %v782 = vadd.f32 0.0, %v781
          %v783 = vpop.f32.mrf.mxu0
          %v784 = vpop.f32.mrf.mxu0
          %v785 = vpop.f32.mrf.mxu0
          %786 = vdwg.mxu0
          %787 = vrot.lane.b32.xlu0 %v452, 104
          %v788 = vpop.permute.xlu0 %787
          %789 = vrot.lane.b32.xlu0 %v452, 72
          %v790 = vpop.permute.xlu0 %789
          %v792 = vsel %vm456, %v788, 0
          %v795 = vsel %vm456, %v790, 0
          %797 = vmatprep.subr.bf16.mxu0 0
          %798 = vmatpush1.bf16.xpose.msra.mxu0 0
          %799 = vmatprep.subr.bf16.mxu0 0
          %800 = vmatpush1.bf16.xpose.msra.mxu0 0
          %801 = vmatprep.subr.bf16.mxu0 0
          %802 = vmatpush1.bf16.xpose.msra.mxu0 0
          %803 = vmatprep.subr.bf16.mxu0 0
          %804 = vmatpush1.bf16.xpose.msra.mxu0 0
          %805 = vmatprep.subr.bf16.mxu0 0
          %806 = vmatpush1.bf16.xpose.msra.mxu0 0
          %807 = vmatprep.subr.bf16.mxu0 0
          %808 = vmatpush1.bf16.xpose.msra.mxu0 0
          %809 = vmatprep.subr.bf16.mxu0 0
          %810 = vmatpush1.bf16.xpose.msra.mxu0 0
          %811 = vmatprep.subr.bf16.mxu0 0
          %812 = vmatpush1.bf16.xpose.msra.mxu0 %v795
          %813 = vmatprep.subr.bf16.mxu0 0
          %814 = vmatpush2.bf16.xpose.msra.mxu0 0
          %815 = vmatprep.subr.bf16.mxu0 0
          %816 = vmatpush2.bf16.xpose.msra.mxu0 0
          %817 = vmatprep.subr.bf16.mxu0 0
          %818 = vmatpush2.bf16.xpose.msra.mxu0 0
          %819 = vmatprep.subr.bf16.mxu0 0
          %820 = vmatpush2.bf16.xpose.msra.mxu0 0
          %821 = vmatprep.subr.bf16.mxu0 0
          %822 = vmatpush2.bf16.xpose.msra.mxu0 0
          %823 = vmatprep.subr.bf16.mxu0 0
          %824 = vmatpush2.bf16.xpose.msra.mxu0 0
          %825 = vmatprep.subr.bf16.mxu0 0
          %826 = vmatpush2.bf16.xpose.msra.mxu0 0
          %827 = vmatprep.subr.bf16.mxu0 0
          %828 = vmatpush2.bf16.xpose.msra.mxu0 0
          %829 = vmatprep.mubr.bf16.mxu0 0
          %830 = vmatmul.mubr.bf16.gmra.mxu0 %v792
          %v831 = vpop.f32.mrf.mxu0
          %v832 = vadd.f32 0.0, %v831
          %v833 = vpop.f32.mrf.mxu0
          %v834 = vpop.f32.mrf.mxu0
          %v835 = vpop.f32.mrf.mxu0
          %836 = vdwg.mxu0
          %v837 = vmul.f32 %v832, 0.35355338
          %v838 = vsel %vm456, %v837, -inf
          %839 = vmax.xlane.f32.xlu0 %v838
          %v840 = vpop.xlane.xlu0 %839
          %v841 = vsub.f32 %v837, %v840
          %v842 = vmul.f32 %v841, 1.442695
          %v843 = vpow.pop %v842
          %v844 = vsel %vm456, %v843, 0.0
          %845 = vadd.xlane.f32.xlu0 %v844
          %v846 = vpop.xlane.xlu0 %845
          %v847 = vrcp.pop %v846
          %v848 = vmul.f32 %v843, %v847
          %v849 = vpack.c.bf16 %v848, %v848
          %850 = vrot.lane.b32.xlu0 %v452, 40
          %v851 = vpop.permute.xlu0 %850
          %v853 = vsel %vm456, %v849, 0
          %v856 = vsel %vm521, %v851, 0
          %858 = vmatprep.subr.bf16.mxu0 0
          %859 = vmatpush1.bf16.msra.mxu0 0
          %860 = vmatprep.subr.bf16.mxu0 0
          %861 = vmatpush1.bf16.msra.mxu0 0
          %862 = vmatprep.subr.bf16.mxu0 0
          %863 = vmatpush1.bf16.msra.mxu0 0
          %864 = vmatprep.subr.bf16.mxu0 0
          %865 = vmatpush1.bf16.msra.mxu0 0
          %866 = vmatprep.subr.bf16.mxu0 0
          %867 = vmatpush1.bf16.msra.mxu0 0
          %868 = vmatprep.subr.bf16.mxu0 0
          %869 = vmatpush1.bf16.msra.mxu0 0
          %870 = vmatprep.subr.bf16.mxu0 0
          %871 = vmatpush1.bf16.msra.mxu0 0
          %872 = vmatprep.subr.bf16.mxu0 0
          %873 = vmatpush1.bf16.msra.mxu0 %v856
          %874 = vmatprep.subr.bf16.mxu0 0
          %875 = vmatpush2.bf16.msra.mxu0 0
          %876 = vmatprep.subr.bf16.mxu0 0
          %877 = vmatpush2.bf16.msra.mxu0 0
          %878 = vmatprep.subr.bf16.mxu0 0
          %879 = vmatpush2.bf16.msra.mxu0 0
          %880 = vmatprep.subr.bf16.mxu0 0
          %881 = vmatpush2.bf16.msra.mxu0 0
          %882 = vmatprep.subr.bf16.mxu0 0
          %883 = vmatpush2.bf16.msra.mxu0 0
          %884 = vmatprep.subr.bf16.mxu0 0
          %885 = vmatpush2.bf16.msra.mxu0 0
          %886 = vmatprep.subr.bf16.mxu0 0
          %887 = vmatpush2.bf16.msra.mxu0 0
          %888 = vmatprep.subr.bf16.mxu0 0
          %889 = vmatpush2.bf16.msra.mxu0 0
          %890 = vmatprep.mubr.bf16.mxu0 0
          %891 = vmatmul.mubr.bf16.gmra.mxu0 %v853
          %v892 = vpop.f32.mrf.mxu0
          %v893 = vadd.f32 0.0, %v892
          %v894 = vpop.f32.mrf.mxu0
          %v895 = vpop.f32.mrf.mxu0
          %v896 = vpop.f32.mrf.mxu0
          %897 = vdwg.mxu0
          %899 = vrot.lane.b32.xlu0 %v671, 8
          %v900 = vpop.permute.xlu0 %899
          %903 = vrot.lane.b32.xlu0 %v782, 16
          %v904 = vpop.permute.xlu0 %903
          %907 = vrot.lane.b32.xlu0 %v893, 24
          %v908 = vpop.permute.xlu0 %907
          %v910 = vsel %vm456, %v560, %v900
          %vm911 = vcmask 130048
          %v912 = vsel %vm911, %v910, %v904
          %vm913 = vcmask 195584
          %v914 = vsel %vm913, %v912, %v908
          %v915 = vadd.f32 %v383, %v914
          %v916 = vsel %vm408, %v915, 0.0
          %917 = vadd.xlane.f32.xlu0 %v916
          %v918 = vpop.xlane.xlu0 %917
          %v919 = vrcp.pop 32.0
          %v920 = vmul.f32 %v918, %v919
          %v921 = vsub.f32 %v915, %v920
          %v922 = vmul.f32 %v921, %v921
          %v923 = vsel %vm408, %v922, 0.0
          %924 = vadd.xlane.f32.xlu0 %v923
          %v925 = vpop.xlane.xlu0 %924
          %v926 = vmul.f32 %v925, 0.032258064
          %v927 = vadd.f32 %v926, 1e-05
          %v928 = vrsqrt.pop %v927
          %v929 = vmul.f32 %v921, %v928
          %v930 = vpack.c.bf16 %v929, %v929
          %v931 = vld [vmem:[%s3] sm:$0xf]
          %v932 = vld [vmem:[%s3 + $0x4] sm:$0xf]
          %v933 = vld [vmem:[%s3 + $0x8] sm:$0xf]
          %v934 = vld [vmem:[%s3 + $0xc] sm:$0xf]
          %v935 = vld [vmem:[%s4] sm:$0x1]
          %v937 = vlaneseq
          %v938 = vshrl.u32 %v937, 7
          %v939 = vsub.s32 0, %v938
          %v940 = vrot.slane %v935, %v939
          %v946 = vunpack.c.l.b16 %v931
          %v947 = vunpack.c.l.b16 %v932
          %v948 = vunpack.c.l.b16 %v933
          %v949 = vunpack.c.l.b16 %v934
          %v950 = vpack.c.b16 %v947, %v946
          %v951 = vpack.c.b16 %v949, %v948
          %v955 = vsel %vm408, %v930, 0
          %957 = vmatprep.subr.bf16.mxu0 0
          %958 = vmatpush1.bf16.msra.mxu0 0
          %959 = vmatprep.subr.bf16.mxu0 0
          %960 = vmatpush1.bf16.msra.mxu0 0
          %961 = vmatprep.subr.bf16.mxu0 0
          %962 = vmatpush1.bf16.msra.mxu0 0
          %963 = vmatprep.subr.bf16.mxu0 0
          %964 = vmatpush1.bf16.msra.mxu0 0
          %965 = vmatprep.subr.bf16.mxu0 0
          %966 = vmatpush1.bf16.msra.mxu0 0
          %967 = vmatprep.subr.bf16.mxu0 0
          %968 = vmatpush1.bf16.msra.mxu0 0
          %969 = vmatprep.subr.bf16.mxu0 0
          %970 = vmatpush1.bf16.msra.mxu0 %v951
          %971 = vmatprep.subr.bf16.mxu0 0
          %972 = vmatpush1.bf16.msra.mxu0 %v950
          %973 = vmatprep.subr.bf16.mxu0 0
          %974 = vmatpush2.bf16.msra.mxu0 0
          %975 = vmatprep.subr.bf16.mxu0 0
          %976 = vmatpush2.bf16.msra.mxu0 0
          %977 = vmatprep.subr.bf16.mxu0 0
          %978 = vmatpush2.bf16.msra.mxu0 0
          %979 = vmatprep.subr.bf16.mxu0 0
          %980 = vmatpush2.bf16.msra.mxu0 0
          %981 = vmatprep.subr.bf16.mxu0 0
          %982 = vmatpush2.bf16.msra.mxu0 0
          %983 = vmatprep.subr.bf16.mxu0 0
          %984 = vmatpush2.bf16.msra.mxu0 0
          %985 = vmatprep.subr.bf16.mxu0 0
          %986 = vmatpush2.bf16.msra.mxu0 0
          %987 = vmatprep.subr.bf16.mxu0 0
          %988 = vmatpush2.bf16.msra.mxu0 0
          %989 = vmatprep.mubr.bf16.mxu0 0
          %990 = vmatmul.mubr.bf16.gmra.mxu0 %v955
          %v991 = vpop.f32.mrf.mxu0
          %v992 = vadd.f32 %v940, %v991
          %v993 = vpop.f32.mrf.mxu0
          %v994 = vpop.f32.mrf.mxu0
          %v995 = vpop.f32.mrf.mxu0
          %996 = vdwg.mxu0
          %v997 = vmax.f32 %v992, 0.0
          %v998 = vpack.c.bf16 %v997, %v997
          %v999 = vld [vmem:[%s5] sm:$0xf]
          %v1000 = vld [vmem:[%s5 + $0x4] sm:$0xf]
          %v1001 = vld [vmem:[%s5 + $0x8] sm:$0xf]
          %v1002 = vld [vmem:[%s5 + $0xc] sm:$0xf]
          %v1003 = vld [vmem:[%s5 + $0x10] sm:$0xf]
          %v1004 = vld [vmem:[%s5 + $0x14] sm:$0xf]
          %v1005 = vld [vmem:[%s5 + $0x18] sm:$0xf]
          %v1006 = vld [vmem:[%s5 + $0x1c] sm:$0xf]
          %v1007 = vld [vmem:[%s6] sm:$0x1]
          %v1009 = vlaneseq
          %v1010 = vshrl.u32 %v1009, 7
          %v1011 = vsub.s32 0, %v1010
          %v1012 = vrot.slane %v1007, %v1011
          %v1022 = vunpack.c.l.b16 %v999
          %v1023 = vunpack.c.l.b16 %v1000
          %v1024 = vunpack.c.l.b16 %v1001
          %v1025 = vunpack.c.l.b16 %v1002
          %v1026 = vunpack.c.l.b16 %v1003
          %v1027 = vunpack.c.l.b16 %v1004
          %v1028 = vunpack.c.l.b16 %v1005
          %v1029 = vunpack.c.l.b16 %v1006
          %v1030 = vpack.c.b16 %v1023, %v1022
          %v1031 = vpack.c.b16 %v1025, %v1024
          %v1032 = vpack.c.b16 %v1027, %v1026
          %v1033 = vpack.c.b16 %v1029, %v1028
          %vm1038 = vcmask 523264
          %v1040 = vsel %vm1038, %v998, 0
          %1042 = vmatprep.subr.bf16.mxu0 0
          %1043 = vmatpush1.bf16.msra.mxu0 0
          %1044 = vmatprep.subr.bf16.mxu0 0
          %1045 = vmatpush1.bf16.msra.mxu0 0
          %1046 = vmatprep.subr.bf16.mxu0 0
          %1047 = vmatpush1.bf16.msra.mxu0 0
          %1048 = vmatprep.subr.bf16.mxu0 0
          %1049 = vmatpush1.bf16.msra.mxu0 0
          %1050 = vmatprep.subr.bf16.mxu0 0
          %1051 = vmatpush1.bf16.msra.mxu0 %v1033
          %1052 = vmatprep.subr.bf16.mxu0 0
          %1053 = vmatpush1.bf16.msra.mxu0 %v1032
          %1054 = vmatprep.subr.bf16.mxu0 0
          %1055 = vmatpush1.bf16.msra.mxu0 %v1031
          %1056 = vmatprep.subr.bf16.mxu0 0
          %1057 = vmatpush1.bf16.msra.mxu0 %v1030
          %1058 = vmatprep.subr.bf16.mxu0 0
          %1059 = vmatpush2.bf16.msra.mxu0 0
          %1060 = vmatprep.subr.bf16.mxu0 0
          %1061 = vmatpush2.bf16.msra.mxu0 0
          %1062 = vmatprep.subr.bf16.mxu0 0
          %1063 = vmatpush2.bf16.msra.mxu0 0
          %1064 = vmatprep.subr.bf16.mxu0 0
          %1065 = vmatpush2.bf16.msra.mxu0 0
          %1066 = vmatprep.subr.bf16.mxu0 0
          %1067 = vmatpush2.bf16.msra.mxu0 0
          %1068 = vmatprep.subr.bf16.mxu0 0
          %1069 = vmatpush2.bf16.msra.mxu0 0
          %1070 = vmatprep.subr.bf16.mxu0 0
          %1071 = vmatpush2.bf16.msra.mxu0 0
          %1072 = vmatprep.subr.bf16.mxu0 0
          %1073 = vmatpush2.bf16.msra.mxu0 0
          %1074 = vmatprep.mubr.bf16.mxu0 0
          %1075 = vmatmul.mubr.bf16.gmra.mxu0 %v1040
          %v1076 = vpop.f32.mrf.mxu0
          %v1077 = vadd.f32 %v1012, %v1076
          %v1078 = vpop.f32.mrf.mxu0
          %v1079 = vpop.f32.mrf.mxu0
          %v1080 = vpop.f32.mrf.mxu0
          %1081 = vdwg.mxu0
          %v1082 = vadd.f32 %v929, %v1077
          %v1083 = vsel %vm408, %v1082, 0.0
          %1084 = vadd.xlane.f32.xlu0 %v1083
          %v1085 = vpop.xlane.xlu0 %1084
          %v1086 = vmul.f32 %v1085, %v919
          %v1087 = vsub.f32 %v1082, %v1086
          %v1088 = vmul.f32 %v1087, %v1087
          %v1089 = vsel %vm408, %v1088, 0.0
          %1090 = vadd.xlane.f32.xlu0 %v1089
          %v1091 = vpop.xlane.xlu0 %1090
          %v1092 = vmul.f32 %v1091, 0.032258064
          %v1093 = vadd.f32 %v1092, 1e-05
          %v1094 = vrsqrt.pop %v1093
          %v1095 = vmul.f32 %v1087, %v1094
          %v1096 = vpack.c.bf16 %v1095, %v1095
          %vm1097 = vcmask 257024
          %1098 = vst.msk [vmem:[#allocation2] sm:$0xf] %vm1097, %v1096
        $region64: #{tpu_custom_call.1} parent=55 // pred_fallthru
          _
        %v1099 = vld [vmem:[#allocation2] sm:$0xf]
        %v1100 = vld [vmem:[#allocation3] sm:$0xf]
        %v1101 = vld [vmem:[#allocation3 + $0x4] sm:$0xf]
        %v1102 = vld [vmem:[#allocation3 + $0x8] sm:$0xf]
        %v1103 = vld [vmem:[#allocation3 + $0xc] sm:$0xf]
        %v1104 = vld [vmem:[%s377] sm:$0x1]
        %v1106 = vlaneseq
        %v1107 = vshrl.u32 %v1106, 7
        %v1108 = vsub.s32 0, %v1107
        %v1109 = vrot.slane %v1104, %v1108
        %v1115 = vunpack.c.l.b16 %v1100
        %v1116 = vunpack.c.l.b16 %v1101
        %v1117 = vunpack.c.l.b16 %v1102
        %v1118 = vunpack.c.l.b16 %v1103
        %v1119 = vpack.c.b16 %v1116, %v1115
        %v1120 = vpack.c.b16 %v1118, %v1117
        %vm1123 = vcmask 261120
        %v1125 = vsel %vm1123, %v1099, 0
        %1127 = vmatprep.subr.bf16.mxu0 0
        %1128 = vmatpush1.bf16.msra.mxu0 0
        %1129 = vmatprep.subr.bf16.mxu0 0
        %1130 = vmatpush1.bf16.msra.mxu0 0
        %1131 = vmatprep.subr.bf16.mxu0 0
        %1132 = vmatpush1.bf16.msra.mxu0 0
        %1133 = vmatprep.subr.bf16.mxu0 0
        %1134 = vmatpush1.bf16.msra.mxu0 0
        %1135 = vmatprep.subr.bf16.mxu0 0
        %1136 = vmatpush1.bf16.msra.mxu0 0
        %1137 = vmatprep.subr.bf16.mxu0 0
        %1138 = vmatpush1.bf16.msra.mxu0 0
        %1139 = vmatprep.subr.bf16.mxu0 0
        %1140 = vmatpush1.bf16.msra.mxu0 %v1120
        %1141 = vmatprep.subr.bf16.mxu0 0
        %1142 = vmatpush1.bf16.msra.mxu0 %v1119
        %1143 = vmatprep.subr.bf16.mxu0 0
        %1144 = vmatpush2.bf16.msra.mxu0 0
        %1145 = vmatprep.subr.bf16.mxu0 0
        %1146 = vmatpush2.bf16.msra.mxu0 0
        %1147 = vmatprep.subr.bf16.mxu0 0
        %1148 = vmatpush2.bf16.msra.mxu0 0
        %1149 = vmatprep.subr.bf16.mxu0 0
        %1150 = vmatpush2.bf16.msra.mxu0 0
        %1151 = vmatprep.subr.bf16.mxu0 0
        %1152 = vmatpush2.bf16.msra.mxu0 0
        %1153 = vmatprep.subr.bf16.mxu0 0
        %1154 = vmatpush2.bf16.msra.mxu0 0
        %1155 = vmatprep.subr.bf16.mxu0 0
        %1156 = vmatpush2.bf16.msra.mxu0 0
        %1157 = vmatprep.subr.bf16.mxu0 0
        %1158 = vmatpush2.bf16.msra.mxu0 0
        %1159 = vmatprep.mubr.bf16.mxu0 0
        %1160 = vmatmul.mubr.bf16.gmra.mxu0 %v1125
        %v1161 = vpop.f32.mrf.mxu0
        %v1162 = vadd.f32 %v1109, %v1161
        %v1163 = vpop.f32.mrf.mxu0
        %v1164 = vpop.f32.mrf.mxu0
        %v1165 = vpop.f32.mrf.mxu0
        %1166 = vdwg.mxu0
        %1167 = vst [vmem:[%s370] sm:$0xff] %v1162
        %s1168 = sand.u32 %s250, 1
        %s1169 = scalar_lea.sflag [#allocation5], %s1168
        %s1170 = sand.u32 %s250, 1
        %s1171 = smul.addr %s1170, 8
        %s1172 = scalar_lea.vmem [#allocation6], %s1171
        // Predicated region
        $region65: #{tpu_custom_call.1} parent=55 // pred_check
          %p1173 = pneg %p260
        $region66: #{tpu_custom_call.1} parent=55 // pred_check_branch
          %1175 = sbr.rel (%p1173) target = $region68
        $region67: #{tpu_custom_call.1} parent=55 // pred_region
          %s1177 = ssub.s32 128, 128
          %1178 = vsyncadd %s1169, %s1177
          %s1179 = sadd.s32 %s29, %s28
          %s1180 = smul.addr %s1179, 128
          %s1181 = scalar_lea.hbm %s9, %s1180
          %s1183 = sshll.u32 %s1172, 4
          %s1184 = int_to_ptr.vmem [resolvable:$true] %s1183
          %1186 = dma.vmem_to_hbm [thread:$0]  %s1184, 128, %s1181, %s1169
        $region68: #{tpu_custom_call.1} parent=55 // pred_fallthru
          _
      $region56: #{tpu_custom_call.1} parent=5 // pred_fallthru
        _
      %p1187 = scmp.le.s32.totalorder 2, %s19
      // Predicated region
      $region69: #{tpu_custom_call.1} parent=5 // pred_check
        %p1188 = pneg %p1187
      $region70: #{tpu_custom_call.1} parent=5 // pred_check_branch
        %1190 = sbr.rel (%p1188) target = $region72
      $region71: #{tpu_custom_call.1} parent=5 // pred_region
        %s1191 = ssub.s32 %s19, 2
        // Predicated region
        $region73: #{tpu_custom_call.1} parent=71 // pred_check
          %p1192 = pneg %p266
        $region74: #{tpu_custom_call.1} parent=71 // pred_check_branch
          %1194 = sbr.rel (%p1192) target = $region76
        $region75: #{tpu_custom_call.1} parent=71 // pred_region
          %s1195 = sand.u32 %s251, 1
          %s1196 = scalar_lea.sflag [#allocation5], %s1195
          %s1197 = sand.u32 %s251, 1
          %s1198 = smul.addr %s1197, 8
          %s1199 = scalar_lea.vmem [#allocation6], %s1198
          %1200 = dma.done %s1196, 128
        $region76: #{tpu_custom_call.1} parent=71 // pred_fallthru
          _
      $region72: #{tpu_custom_call.1} parent=5 // pred_fallthru
        _
    $region6: #{tpu_custom_call.1} parent=1 // loop_footer
      %s23 = sadd.s32 1, %s19
    $region7: #{tpu_custom_call.1} parent=1 // loop_footer_branch
      %18 = sbr.rel target = $region3
    $region8: #{tpu_custom_call.1} parent=1 // loop_exit
      _
    %1201 = vsyncpa [#allocation4], 1
    %s1202 = scalar_lea.sflag [#allocation4], 1
    %1203 = vsyncpa %s1202, 1
    %1204 = vsyncpa [#allocation5], 1
    %s1205 = scalar_lea.sflag [#allocation5], 1
    %1206 = vsyncpa %s1205, 1

</llo_original>
